<compile_context>
chip_gen: v6e
topology: v6e:2x2x1
jax: 0.10.0
libtpu: 0.0.40
codegen_flags: <defaults>
</compile_context>

<pallas_src>
import functools

import jax
import jax.numpy as jnp
from jax import lax
from jax.experimental import pallas as pl
from jax.experimental.pallas import tpu as pltpu


def _round_up(x, m):
    return (x + m - 1) // m * m


def _pick_th(H, W, KH, KW, Wp, Cp, Coutp, in_bytes, dw_bytes, vmem_budget):
    """Largest row tile TH such that:
      * TH divides H,
      * the flat output tile TH*W is lane-dense (multiple of 128) or TH == H,
      * TH*W stays within the ~2048-lane sweet spot when possible,
      * the double-buffered halo band + intermediates + output tiles fit the VMEM budget."""
    def vmem_cost(th):
        tband = th + KH - 1
        band = 2 * tband * Wp * Cp * in_bytes                 # double-buffered input halo bands
        halo = tband * Wp * Cp * max(dw_bytes, in_bytes)      # loaded halo value
        inter = th * Wp * Cp * dw_bytes + th * W * Cp * 4     # depthwise acc + MXU operand
        outb = 2 * Coutp * th * W * 4                         # double-buffered output tile
        weights = (Coutp * Cp + KH * KW * Cp + Cp + Coutp) * 4 * 2
        return band + halo + inter + outb + weights

    cands = [th for th in range(1, H + 1)
             if H % th == 0 and (th == H or (th * W) % 128 == 0)]
    fitting = [th for th in cands if vmem_cost(th) <= 0.8 * vmem_budget]
    pool = fitting if fitting else [min(cands)]
    capped = [th for th in pool if th * W <= 2048]
    return max(capped) if capped else min(pool)


def separable_conv_kernel(x_hbm, dw_w_ref, dw_b_ref, pw_wt_ref, pw_b_ref, out_ref,
                          band_buf, band_sem, *, W, dw_dtype, mxu_dtype):
    # x_hbm   : (N, Hp, Wp, Cp)    raw HBM ref (pl.ANY); halo'd row bands DMA'd manually
    # dw_w_ref: (KH, KW, Cp)       depthwise taps, BN scale pre-folded
    # dw_b_ref: (1, Cp)            folded depthwise (conv bias + eval BN) bias
    # pw_wt   : (Coutp, Cp)        pointwise weights, transposed, BN scale pre-folded into rows
    # pw_b    : (Coutp, 1)         folded pointwise bias
    # out_ref : (1, Coutp, TH*W)   lane-dense flattened-NCHW output tile for rows [h*TH,(h+1)*TH)
    # band_buf: (2, TBAND, Wp, Cp) double-buffered input halo bands; band_sem: (2,) DMA sems
    KH, KW, Cp = dw_w_ref.shape
    TH = out_ref.shape[2] // W
    TBAND = band_buf.shape[1]
    n = pl.program_id(0)
    h = pl.program_id(1)
    num_h = pl.num_programs(1)
    slot = h % 2

    def start_fetch(hh, s):
        pltpu.make_async_copy(
            x_hbm.at[n, pl.ds(hh * TH, TBAND), :, :],
            band_buf.at[s], band_sem.at[s]).start()

    # Prime the pipeline at the first row band of each image.  The h axis is "arbitrary",
    # so it runs in order on one core per image -> priming per image is megacore-safe.
    @pl.when(h == 0)
    def _():
        start_fetch(h, slot)

    # Prefetch the next row band of the same image into the other buffer.
    # (start index clamped so the traced DMA descriptor is always in-bounds)
    @pl.when(h + 1 < num_h)
    def _():
        start_fetch(jnp.minimum(h + 1, num_h - 1), 1 - slot)

    # Wait for the current halo band.
    pltpu.make_async_copy(x_hbm.at[n, pl.ds(0, TBAND), :, :],
                          band_buf.at[slot], band_sem.at[slot]).wait()

    # ---- depthwise 'same' conv, stride 1: VPU shift-and-accumulate over the taps ----
    # Single load of the halo band; per-tap row bands are static value slices of it.
    halo = band_buf[slot].astype(dw_dtype)                  # (TBAND, Wp, Cp)
    taps = dw_w_ref[...].astype(dw_dtype)                   # (KH, KW, Cp)
    acc = None
    for i in range(KH):
        band_i = halo[i:i + TH]                             # (TH, Wp, Cp) static leading-axis slice
        for j in range(KW):
            # TODO(synk): pltpu.roll(band_i, shift, axis=1) would move this sublane shift
            # to the XLU (which has slack); kept as a plain value slice for robustness.
            contrib = band_i[:, j:j + W, :] * taps[i, j, :]
            acc = contrib if acc is None else acc + contrib
    # bias + ReLU only — the BN scale is already folded into the taps
    dw = jnp.maximum(acc + dw_b_ref[0, :].astype(dw_dtype), 0)          # (TH, W, Cp)

    # ---- pointwise 1x1 conv on the MXU, transposed so the result is lane-dense ----
    # TODO(synk): for production Cout >= 128, switch to the canonical dot(dw_flat, pw_w)
    # orientation (output stays lane-dense) if the lowering shows a vxpose of dw_flat.
    dw_flat = dw.reshape(TH * W, Cp).astype(mxu_dtype)      # W % 8 == 0 -> layout-preserving
    wt = pw_wt_ref[...].astype(mxu_dtype)                   # (Coutp, Cp)
    y = lax.dot_general(wt, dw_flat,
                        dimension_numbers=(((1,), (1,)), ((), ())),
                        preferred_element_type=jnp.float32)             # (Coutp, TH*W)
    y = jnp.maximum(y + pw_b_ref[...], 0.0)
    out_ref[0, :, :] = y.astype(out_ref.dtype)


def separable_conv(x_nchw, dw_w_torch, dw_conv_bias, bn1, pw_w_torch, pw_conv_bias, bn2,
                   *, eps=1e-5, storage_dtype=jnp.bfloat16, dw_compute_dtype=None,
                   mxu_dtype=jnp.bfloat16, vmem_budget=None):
    """SeparableConv forward (eval-mode BN) with PyTorch-layout parameters.

    x_nchw      : (N, C, H, W)
    dw_w_torch  : (C, 1, KH, KW)    depthwise conv weight
    pw_w_torch  : (Cout, C, 1, 1)   pointwise conv weight
    bn1 / bn2   : (gamma, beta, running_mean, running_var)
    returns     : (N, Cout, H, W)
    """
    N, C, H, W = x_nchw.shape
    Cout = pw_w_torch.shape[0]
    KH, KW = int(dw_w_torch.shape[2]), int(dw_w_torch.shape[3])
    assert KH % 2 == 1 and KW % 2 == 1, "stride-1 'same' padding assumes odd kernel sizes"
    # TODO(synk): pad W to a multiple of 8 in the wrapper to support arbitrary widths; the
    # guard keeps the (TH, W, Cp) -> (TH*W, Cp) reshape layout-preserving (no retile copies).
    assert W % 8 == 0, "W must be a multiple of 8 (sublane alignment)"
    pH, pW = KH // 2, KW // 2

    # per-generation configuration
    try:
        kind = jax.devices()[0].device_kind.lower()
    except Exception:
        kind = ""
    if dw_compute_dtype is None:
        # v5e has no bf16 VALU -> keep the depthwise shift-accumulate in f32 there.
        dw_compute_dtype = jnp.float32 if "v5" in kind else jnp.bfloat16
    if vmem_budget is None:
        # v7x has 64 MiB physical VMEM per core; v5e/v6e have 128 MiB.
        vmem_budget = (48 << 20) if "v7" in kind else (64 << 20)

    LANE = 128
    Cp = _round_up(C, LANE)                      # fill the 128-lane axis
    Coutp = _round_up(Cout, 8)                   # sublane-aligned output rows
    Hp, Wp = H + 2 * pH, W + 2 * pW

    in_bytes = jnp.dtype(storage_dtype).itemsize
    dw_bytes = jnp.dtype(dw_compute_dtype).itemsize
    TH = _pick_th(H, W, KH, KW, Wp, Cp, Coutp, in_bytes, dw_bytes, vmem_budget)
    TBAND = TH + KH - 1
    num_h = H // TH

    # ---- fold conv bias + eval-mode BatchNorm into the weights / per-channel bias ----
    g1, b1, m1, v1 = bn1
    dw_scale = g1 / jnp.sqrt(v1 + eps)
    dw_bias = b1 + (dw_conv_bias - m1) * dw_scale
    g2, b2, m2, v2 = bn2
    pw_scale = g2 / jnp.sqrt(v2 + eps)
    pw_bias = b2 + (pw_conv_bias - m2) * pw_scale

    # ---- one-time HBM layout plumbing: NCHW -> NHWC, spatial 'same' pad, pad C/Cout ----
    x_nhwc = jnp.transpose(x_nchw, (0, 2, 3, 1))
    x_pad = jnp.pad(x_nhwc, ((0, 0), (pH, pH), (pW, pW), (0, Cp - C))).astype(storage_dtype)

    dw_w = jnp.transpose(dw_w_torch[:, 0, :, :], (1, 2, 0)) * dw_scale[None, None, :]
    dw_w = jnp.pad(dw_w, ((0, 0), (0, 0), (0, Cp - C)))                       # (KH, KW, Cp)
    dw_b = jnp.pad(dw_bias, (0, Cp - C)).reshape(1, Cp)

    pw_wt = pw_w_torch[:, :, 0, 0] * pw_scale[:, None]                        # scale folded into rows
    pw_wt = jnp.pad(pw_wt, ((0, Coutp - Cout), (0, Cp - C)))                  # (Coutp, Cp)
    pw_b = jnp.pad(pw_bias, (0, Coutp - Cout)).reshape(Coutp, 1)

    kernel = functools.partial(separable_conv_kernel, W=W,
                               dw_dtype=dw_compute_dtype, mxu_dtype=mxu_dtype)

    out_flat = pl.pallas_call(
        kernel,
        out_shape=jax.ShapeDtypeStruct((N, Coutp, H * W), x_nchw.dtype),
        grid_spec=pltpu.PrefetchScalarGridSpec(
            num_scalar_prefetch=0,
            grid=(N, num_h),
            in_specs=[
                pl.BlockSpec(memory_space=pl.ANY),                    # raw HBM; bands DMA'd manually
                pl.BlockSpec((KH, KW, Cp), lambda n, h: (0, 0, 0)),
                pl.BlockSpec((1, Cp), lambda n, h: (0, 0)),
                pl.BlockSpec((Coutp, Cp), lambda n, h: (0, 0)),
                pl.BlockSpec((Coutp, 1), lambda n, h: (0, 0)),
            ],
            # lane-dense output tile: last dim TH*W is a multiple of 128 (or the full H*W)
            out_specs=pl.BlockSpec((1, Coutp, TH * W), lambda n, h: (n, 0, h)),
            scratch_shapes=[
                pltpu.VMEM((2, TBAND, Wp, Cp), storage_dtype),        # double-buffered halo bands
                pltpu.SemaphoreType.DMA((2,)),
            ],
        ),
        compiler_params=pltpu.CompilerParams(
            # N is megacore-parallel; h stays in-order per image (manual DMA pipeline priming).
            dimension_semantics=("parallel", "arbitrary"),
            vmem_limit_bytes=int(vmem_budget),
        ),
    )(x_pad, dw_w, dw_b, pw_wt, pw_b)

    # (N, Coutp, H*W) -> NCHW: slice off the Cout padding and reshape (no transpose needed)
    return out_flat[:, :Cout, :].reshape(N, Cout, H, W)


def reference_separable(x_nchw, dw_w_torch, dw_cb, bn1, pw_w_torch, pw_cb, bn2, eps=1e-5):
    """Pure-JAX reference mirroring the PyTorch forward (eval-mode BN)."""
    C = x_nchw.shape[1]
    y = lax.conv_general_dilated(
        x_nchw, dw_w_torch, window_strides=(1, 1), padding="SAME",
        feature_group_count=C, dimension_numbers=("NCHW", "OIHW", "NCHW"))
    y = y + dw_cb[None, :, None, None]
    g, b, m, v = bn1
    y = (y - m[None, :, None, None]) / jnp.sqrt(v[None, :, None, None] + eps) \
        * g[None, :, None, None] + b[None, :, None, None]
    y = jnp.maximum(y, 0.0)
    z = lax.conv_general_dilated(
        y, pw_w_torch, window_strides=(1, 1), padding="VALID",
        dimension_numbers=("NCHW", "OIHW", "NCHW"))
    z = z + pw_cb[None, :, None, None]
    g, b, m, v = bn2
    z = (z - m[None, :, None, None]) / jnp.sqrt(v[None, :, None, None] + eps) \
        * g[None, :, None, None] + b[None, :, None, None]
    z = jnp.maximum(z, 0.0)
    return z


if __name__ == "__main__":
    # Small shapes consistent with the module: SeparableConv((3,3), in=8, out=16) on 2x8x16x16.
    N, C, Cout, H, W = 2, 8, 16, 16, 16
    KH, KW = 3, 3
    eps = 1e-5

    key = jax.random.PRNGKey(0)
    ks = jax.random.split(key, 12)

    x_nchw = jax.random.normal(ks[0], (N, C, H, W), jnp.float32)

    # depthwise conv params (PyTorch layout (C, 1, KH, KW)) + BN params
    dw_w_torch = jax.random.normal(ks[1], (C, 1, KH, KW), jnp.float32) * 0.3
    dw_cb = jax.random.normal(ks[2], (C,), jnp.float32) * 0.1
    bn1 = (jax.random.uniform(ks[3], (C,), jnp.float32, 0.5, 1.5),
           jax.random.normal(ks[4], (C,), jnp.float32) * 0.1,
           jax.random.normal(ks[5], (C,), jnp.float32) * 0.1,
           jax.random.uniform(ks[6], (C,), jnp.float32, 0.5, 1.5))

    # pointwise conv params (PyTorch layout (Cout, C, 1, 1)) + BN params
    pw_w_torch = jax.random.normal(ks[7], (Cout, C, 1, 1), jnp.float32) * 0.3
    pw_cb = jax.random.normal(ks[8], (Cout,), jnp.float32) * 0.1
    bn2 = (jax.random.uniform(ks[9], (Cout,), jnp.float32, 0.5, 1.5),
           jax.random.normal(ks[10], (Cout,), jnp.float32) * 0.1,
           jax.random.normal(ks[11], (Cout,), jnp.float32) * 0.1,
           jnp.ones((Cout,), jnp.float32))

    # all-f32 exactness path and the production bf16 path (bf16 HBM storage + MXU,
    # depthwise compute dtype chosen per TPU generation).
    out_f32 = separable_conv(x_nchw, dw_w_torch, dw_cb, bn1, pw_w_torch, pw_cb, bn2,
                             eps=eps, storage_dtype=jnp.float32,
                             dw_compute_dtype=jnp.float32, mxu_dtype=jnp.float32)
    out_f32 = jax.block_until_ready(out_f32)

    out_bf16 = separable_conv(x_nchw, dw_w_torch, dw_cb, bn1, pw_w_torch, pw_cb, bn2, eps=eps)
    out_bf16 = jax.block_until_ready(out_bf16)

    ref = reference_separable(x_nchw, dw_w_torch, dw_cb, bn1, pw_w_torch, pw_cb, bn2, eps)
    ref = jax.block_until_ready(ref)

    assert jnp.allclose(out_f32, ref, atol=2e-4, rtol=2e-4), \
        f"f32 path: max abs err {jnp.max(jnp.abs(out_f32 - ref))}"
    # tolerance sized for bf16 input storage + bf16 depthwise/MXU operands (f32 accumulation)
    assert jnp.allclose(out_bf16, ref, atol=1e-1, rtol=1e-1), \
        f"bf16 path: max abs err {jnp.max(jnp.abs(out_bf16 - ref))}"
    print("KERNEL_OK")
</pallas_src>

<mosaic_0001>
module attributes {stable_mosaic.version = 11 : i64} {
  func.func @separable_conv_kernel(%arg0: i32, %arg1: i32, %arg2: memref<2x18x18x128xf32, #tpu.memory_space<any>>, %arg3: memref<3x3x128xf32, #tpu.memory_space<vmem>>, %arg4: memref<1x128xf32, #tpu.memory_space<vmem>>, %arg5: memref<16x128xf32, #tpu.memory_space<vmem>>, %arg6: memref<16x1xf32, #tpu.memory_space<vmem>>, %arg7: memref<1x16x256xf32, #tpu.memory_space<vmem>>, %arg8: memref<2x18x18x128xf32, #tpu.memory_space<vmem>>, %arg9: memref<2x!tpu.dma_semaphore, #tpu.memory_space<semaphore_mem>>) attributes {dimension_semantics = [#tpu.dimension_semantics<parallel>, #tpu.dimension_semantics<arbitrary>], iteration_bounds = array<i64: 2, 1>, scalar_prefetch = 0 : i64, scratch_operands = 2 : i64, tpu.core_type = #tpu.core_type<tc>, window_params = [{}, {pipeline_mode = #tpu.pipeline_mode<synchronous>, transform_indices = @transform_1, window_bounds = array<i64: 3, 3, 128>}, {pipeline_mode = #tpu.pipeline_mode<synchronous>, transform_indices = @transform_2, window_bounds = array<i64: 1, 128>}, {pipeline_mode = #tpu.pipeline_mode<synchronous>, transform_indices = @transform_3, window_bounds = array<i64: 16, 128>}, {pipeline_mode = #tpu.pipeline_mode<synchronous>, transform_indices = @transform_4, window_bounds = array<i64: 16, 1>}, {transform_indices = @transform_5, window_bounds = array<i64: 1, 16, 256>}]} {
    %c2_i32 = arith.constant 2 : i32
    %c0_i32 = arith.constant 0 : i32
    %0 = arith.cmpi eq, %c2_i32, %c0_i32 : i32
    %c1_i32 = arith.constant 1 : i32
    %1 = arith.select %0, %c1_i32, %c2_i32 : i32
    %2 = arith.remsi %arg1, %1 : i32
    %c0_i32_0 = arith.constant 0 : i32
    %3 = arith.cmpi ne, %2, %c0_i32_0 : i32
    %c0_i32_1 = arith.constant 0 : i32
    %4 = arith.cmpi slt, %2, %c0_i32_1 : i32
    %c0_i32_2 = arith.constant 0 : i32
    %5 = arith.cmpi slt, %1, %c0_i32_2 : i32
    %6 = arith.xori %4, %5 : i1
    %7 = arith.andi %6, %3 : i1
    %8 = arith.addi %2, %1 : i32
    %9 = arith.select %7, %8, %2 : i32
    %c0_i32_3 = arith.constant 0 : i32
    %10 = arith.cmpi eq, %arg1, %c0_i32_3 : i32
    %11 = arith.extui %10 : i1 to i32
    %c0_i32_4 = arith.constant 0 : i32
    %12 = arith.cmpi ne, %11, %c0_i32_4 : i32
    scf.if %12 {
      %c16_i32 = arith.constant 16 : i32
      %110 = arith.muli %arg1, %c16_i32 : i32
      %c0_i32_30 = arith.constant 0 : i32
      %c0_i32_31 = arith.constant 0 : i32
      %111 = tpu.memref_slice %arg2[%arg0, %110, %c0_i32_30, %c0_i32_31] : memref<2x18x18x128xf32, #tpu.memory_space<any>> -> memref<1x18x18x128xf32, #tpu.memory_space<any>>
      %112 = tpu.memref_squeeze %111 : memref<1x18x18x128xf32, #tpu.memory_space<any>> -> memref<18x18x128xf32, #tpu.memory_space<any>>
      %c0_i32_32 = arith.constant 0 : i32
      %c0_i32_33 = arith.constant 0 : i32
      %c0_i32_34 = arith.constant 0 : i32
      %113 = tpu.memref_slice %arg8[%9, %c0_i32_32, %c0_i32_33, %c0_i32_34] : memref<2x18x18x128xf32, #tpu.memory_space<vmem>> -> memref<1x18x18x128xf32, #tpu.memory_space<vmem>>
      %114 = tpu.memref_squeeze %113 : memref<1x18x18x128xf32, #tpu.memory_space<vmem>> -> memref<18x18x128xf32, #tpu.memory_space<vmem>>
      %115 = tpu.memref_slice %arg9[%9] : memref<2x!tpu.dma_semaphore, #tpu.memory_space<semaphore_mem>> -> memref<1x!tpu.dma_semaphore, #tpu.memory_space<semaphore_mem>>
      %116 = tpu.memref_squeeze %115 : memref<1x!tpu.dma_semaphore, #tpu.memory_space<semaphore_mem>> -> memref<!tpu.dma_semaphore, #tpu.memory_space<semaphore_mem>>
      tpu.enqueue_dma source(%112 : memref<18x18x128xf32, #tpu.memory_space<any>>) target(%114 : memref<18x18x128xf32, #tpu.memory_space<vmem>>) target_semaphore(%116 : memref<!tpu.dma_semaphore, #tpu.memory_space<semaphore_mem>>)
    } else {
    }
    %c1_i32_5 = arith.constant 1 : i32
    %13 = arith.addi %arg1, %c1_i32_5 : i32
    %c1_i32_6 = arith.constant 1 : i32
    %14 = arith.cmpi slt, %13, %c1_i32_6 : i32
    %15 = arith.extui %14 : i1 to i32
    %c0_i32_7 = arith.constant 0 : i32
    %16 = arith.cmpi ne, %15, %c0_i32_7 : i32
    scf.if %16 {
      %c1_i32_30 = arith.constant 1 : i32
      %110 = arith.addi %arg1, %c1_i32_30 : i32
      %c0_i32_31 = arith.constant 0 : i32
      %111 = arith.minsi %110, %c0_i32_31 : i32
      %c1_i32_32 = arith.constant 1 : i32
      %112 = arith.subi %c1_i32_32, %9 : i32
      %c16_i32 = arith.constant 16 : i32
      %113 = arith.muli %111, %c16_i32 : i32
      %c0_i32_33 = arith.constant 0 : i32
      %c0_i32_34 = arith.constant 0 : i32
      %114 = tpu.memref_slice %arg2[%arg0, %113, %c0_i32_33, %c0_i32_34] : memref<2x18x18x128xf32, #tpu.memory_space<any>> -> memref<1x18x18x128xf32, #tpu.memory_space<any>>
      %115 = tpu.memref_squeeze %114 : memref<1x18x18x128xf32, #tpu.memory_space<any>> -> memref<18x18x128xf32, #tpu.memory_space<any>>
      %c0_i32_35 = arith.constant 0 : i32
      %c0_i32_36 = arith.constant 0 : i32
      %c0_i32_37 = arith.constant 0 : i32
      %116 = tpu.memref_slice %arg8[%112, %c0_i32_35, %c0_i32_36, %c0_i32_37] : memref<2x18x18x128xf32, #tpu.memory_space<vmem>> -> memref<1x18x18x128xf32, #tpu.memory_space<vmem>>
      %117 = tpu.memref_squeeze %116 : memref<1x18x18x128xf32, #tpu.memory_space<vmem>> -> memref<18x18x128xf32, #tpu.memory_space<vmem>>
      %118 = tpu.memref_slice %arg9[%112] : memref<2x!tpu.dma_semaphore, #tpu.memory_space<semaphore_mem>> -> memref<1x!tpu.dma_semaphore, #tpu.memory_space<semaphore_mem>>
      %119 = tpu.memref_squeeze %118 : memref<1x!tpu.dma_semaphore, #tpu.memory_space<semaphore_mem>> -> memref<!tpu.dma_semaphore, #tpu.memory_space<semaphore_mem>>
      tpu.enqueue_dma source(%115 : memref<18x18x128xf32, #tpu.memory_space<any>>) target(%117 : memref<18x18x128xf32, #tpu.memory_space<vmem>>) target_semaphore(%119 : memref<!tpu.dma_semaphore, #tpu.memory_space<semaphore_mem>>)
    } else {
    }
    %c0_i32_8 = arith.constant 0 : i32
    %c0_i32_9 = arith.constant 0 : i32
    %c0_i32_10 = arith.constant 0 : i32
    %17 = tpu.memref_slice %arg2[%arg0, %c0_i32_8, %c0_i32_9, %c0_i32_10] : memref<2x18x18x128xf32, #tpu.memory_space<any>> -> memref<1x18x18x128xf32, #tpu.memory_space<any>>
    %18 = tpu.memref_squeeze %17 : memref<1x18x18x128xf32, #tpu.memory_space<any>> -> memref<18x18x128xf32, #tpu.memory_space<any>>
    %c0_i32_11 = arith.constant 0 : i32
    %c0_i32_12 = arith.constant 0 : i32
    %c0_i32_13 = arith.constant 0 : i32
    %19 = tpu.memref_slice %arg8[%9, %c0_i32_11, %c0_i32_12, %c0_i32_13] : memref<2x18x18x128xf32, #tpu.memory_space<vmem>> -> memref<1x18x18x128xf32, #tpu.memory_space<vmem>>
    %20 = tpu.memref_squeeze %19 : memref<1x18x18x128xf32, #tpu.memory_space<vmem>> -> memref<18x18x128xf32, #tpu.memory_space<vmem>>
    %21 = tpu.memref_slice %arg9[%9] : memref<2x!tpu.dma_semaphore, #tpu.memory_space<semaphore_mem>> -> memref<1x!tpu.dma_semaphore, #tpu.memory_space<semaphore_mem>>
    %22 = tpu.memref_squeeze %21 : memref<1x!tpu.dma_semaphore, #tpu.memory_space<semaphore_mem>> -> memref<!tpu.dma_semaphore, #tpu.memory_space<semaphore_mem>>
    tpu.wait_dma2 semaphore(%22 : memref<!tpu.dma_semaphore, #tpu.memory_space<semaphore_mem>>) src(%18 : memref<18x18x128xf32, #tpu.memory_space<any>>) dst(%20 : memref<18x18x128xf32, #tpu.memory_space<vmem>>)
    %23 = arith.index_cast %9 : i32 to index
    %c0 = arith.constant 0 : index
    %c0_14 = arith.constant 0 : index
    %c0_15 = arith.constant 0 : index
    %24 = vector.load %arg8[%23, %c0, %c0_14, %c0_15] : memref<2x18x18x128xf32, #tpu.memory_space<vmem>>, vector<1x18x18x128xf32>
    %25 = vector.shape_cast %24 : vector<1x18x18x128xf32> to vector<18x18x128xf32>
    %c0_16 = arith.constant 0 : index
    %c0_17 = arith.constant 0 : index
    %c0_18 = arith.constant 0 : index
    %26 = vector.load %arg3[%c0_16, %c0_17, %c0_18] : memref<3x3x128xf32, #tpu.memory_space<vmem>>, vector<3x3x128xf32>
    %27 = vector.extract_strided_slice %25 {offsets = [0, 0, 0], sizes = [16, 18, 128], strides = [1, 1, 1]} : vector<18x18x128xf32> to vector<16x18x128xf32>
    %28 = vector.extract_strided_slice %27 {offsets = [0, 0, 0], sizes = [16, 16, 128], strides = [1, 1, 1]} : vector<16x18x128xf32> to vector<16x16x128xf32>
    %29 = vector.extract_strided_slice %26 {offsets = [0, 0, 0], sizes = [1, 1, 128], strides = [1, 1, 1]} : vector<3x3x128xf32> to vector<1x1x128xf32>
    %30 = vector.shape_cast %29 : vector<1x1x128xf32> to vector<128xf32>
    %31 = vector.shape_cast %30 : vector<128xf32> to vector<1x1x128xf32>
    %32 = vector.broadcast %31 : vector<1x1x128xf32> to vector<16x16x128xf32>
    %33 = arith.mulf %28, %32 : vector<16x16x128xf32>
    %34 = vector.extract_strided_slice %27 {offsets = [0, 1, 0], sizes = [16, 16, 128], strides = [1, 1, 1]} : vector<16x18x128xf32> to vector<16x16x128xf32>
    %35 = vector.extract_strided_slice %26 {offsets = [0, 1, 0], sizes = [1, 1, 128], strides = [1, 1, 1]} : vector<3x3x128xf32> to vector<1x1x128xf32>
    %36 = vector.shape_cast %35 : vector<1x1x128xf32> to vector<128xf32>
    %37 = vector.shape_cast %36 : vector<128xf32> to vector<1x1x128xf32>
    %38 = vector.broadcast %37 : vector<1x1x128xf32> to vector<16x16x128xf32>
    %39 = arith.mulf %34, %38 : vector<16x16x128xf32>
    %40 = arith.addf %33, %39 : vector<16x16x128xf32>
    %41 = vector.extract_strided_slice %27 {offsets = [0, 2, 0], sizes = [16, 16, 128], strides = [1, 1, 1]} : vector<16x18x128xf32> to vector<16x16x128xf32>
    %42 = vector.extract_strided_slice %26 {offsets = [0, 2, 0], sizes = [1, 1, 128], strides = [1, 1, 1]} : vector<3x3x128xf32> to vector<1x1x128xf32>
    %43 = vector.shape_cast %42 : vector<1x1x128xf32> to vector<128xf32>
    %44 = vector.shape_cast %43 : vector<128xf32> to vector<1x1x128xf32>
    %45 = vector.broadcast %44 : vector<1x1x128xf32> to vector<16x16x128xf32>
    %46 = arith.mulf %41, %45 : vector<16x16x128xf32>
    %47 = arith.addf %40, %46 : vector<16x16x128xf32>
    %48 = vector.extract_strided_slice %25 {offsets = [1, 0, 0], sizes = [16, 18, 128], strides = [1, 1, 1]} : vector<18x18x128xf32> to vector<16x18x128xf32>
    %49 = vector.extract_strided_slice %48 {offsets = [0, 0, 0], sizes = [16, 16, 128], strides = [1, 1, 1]} : vector<16x18x128xf32> to vector<16x16x128xf32>
    %50 = vector.extract_strided_slice %26 {offsets = [1, 0, 0], sizes = [1, 1, 128], strides = [1, 1, 1]} : vector<3x3x128xf32> to vector<1x1x128xf32>
    %51 = vector.shape_cast %50 : vector<1x1x128xf32> to vector<128xf32>
    %52 = vector.shape_cast %51 : vector<128xf32> to vector<1x1x128xf32>
    %53 = vector.broadcast %52 : vector<1x1x128xf32> to vector<16x16x128xf32>
    %54 = arith.mulf %49, %53 : vector<16x16x128xf32>
    %55 = arith.addf %47, %54 : vector<16x16x128xf32>
    %56 = vector.extract_strided_slice %48 {offsets = [0, 1, 0], sizes = [16, 16, 128], strides = [1, 1, 1]} : vector<16x18x128xf32> to vector<16x16x128xf32>
    %57 = vector.extract_strided_slice %26 {offsets = [1, 1, 0], sizes = [1, 1, 128], strides = [1, 1, 1]} : vector<3x3x128xf32> to vector<1x1x128xf32>
    %58 = vector.shape_cast %57 : vector<1x1x128xf32> to vector<128xf32>
    %59 = vector.shape_cast %58 : vector<128xf32> to vector<1x1x128xf32>
    %60 = vector.broadcast %59 : vector<1x1x128xf32> to vector<16x16x128xf32>
    %61 = arith.mulf %56, %60 : vector<16x16x128xf32>
    %62 = arith.addf %55, %61 : vector<16x16x128xf32>
    %63 = vector.extract_strided_slice %48 {offsets = [0, 2, 0], sizes = [16, 16, 128], strides = [1, 1, 1]} : vector<16x18x128xf32> to vector<16x16x128xf32>
    %64 = vector.extract_strided_slice %26 {offsets = [1, 2, 0], sizes = [1, 1, 128], strides = [1, 1, 1]} : vector<3x3x128xf32> to vector<1x1x128xf32>
    %65 = vector.shape_cast %64 : vector<1x1x128xf32> to vector<128xf32>
    %66 = vector.shape_cast %65 : vector<128xf32> to vector<1x1x128xf32>
    %67 = vector.broadcast %66 : vector<1x1x128xf32> to vector<16x16x128xf32>
    %68 = arith.mulf %63, %67 : vector<16x16x128xf32>
    %69 = arith.addf %62, %68 : vector<16x16x128xf32>
    %70 = vector.extract_strided_slice %25 {offsets = [2, 0, 0], sizes = [16, 18, 128], strides = [1, 1, 1]} : vector<18x18x128xf32> to vector<16x18x128xf32>
    %71 = vector.extract_strided_slice %70 {offsets = [0, 0, 0], sizes = [16, 16, 128], strides = [1, 1, 1]} : vector<16x18x128xf32> to vector<16x16x128xf32>
    %72 = vector.extract_strided_slice %26 {offsets = [2, 0, 0], sizes = [1, 1, 128], strides = [1, 1, 1]} : vector<3x3x128xf32> to vector<1x1x128xf32>
    %73 = vector.shape_cast %72 : vector<1x1x128xf32> to vector<128xf32>
    %74 = vector.shape_cast %73 : vector<128xf32> to vector<1x1x128xf32>
    %75 = vector.broadcast %74 : vector<1x1x128xf32> to vector<16x16x128xf32>
    %76 = arith.mulf %71, %75 : vector<16x16x128xf32>
    %77 = arith.addf %69, %76 : vector<16x16x128xf32>
    %78 = vector.extract_strided_slice %70 {offsets = [0, 1, 0], sizes = [16, 16, 128], strides = [1, 1, 1]} : vector<16x18x128xf32> to vector<16x16x128xf32>
    %79 = vector.extract_strided_slice %26 {offsets = [2, 1, 0], sizes = [1, 1, 128], strides = [1, 1, 1]} : vector<3x3x128xf32> to vector<1x1x128xf32>
    %80 = vector.shape_cast %79 : vector<1x1x128xf32> to vector<128xf32>
    %81 = vector.shape_cast %80 : vector<128xf32> to vector<1x1x128xf32>
    %82 = vector.broadcast %81 : vector<1x1x128xf32> to vector<16x16x128xf32>
    %83 = arith.mulf %78, %82 : vector<16x16x128xf32>
    %84 = arith.addf %77, %83 : vector<16x16x128xf32>
    %85 = vector.extract_strided_slice %70 {offsets = [0, 2, 0], sizes = [16, 16, 128], strides = [1, 1, 1]} : vector<16x18x128xf32> to vector<16x16x128xf32>
    %86 = vector.extract_strided_slice %26 {offsets = [2, 2, 0], sizes = [1, 1, 128], strides = [1, 1, 1]} : vector<3x3x128xf32> to vector<1x1x128xf32>
    %87 = vector.shape_cast %86 : vector<1x1x128xf32> to vector<128xf32>
    %88 = vector.shape_cast %87 : vector<128xf32> to vector<1x1x128xf32>
    %89 = vector.broadcast %88 : vector<1x1x128xf32> to vector<16x16x128xf32>
    %90 = arith.mulf %85, %89 : vector<16x16x128xf32>
    %91 = arith.addf %84, %90 : vector<16x16x128xf32>
    %c0_19 = arith.constant 0 : index
    %c0_20 = arith.constant 0 : index
    %92 = vector.load %arg4[%c0_19, %c0_20] : memref<1x128xf32, #tpu.memory_space<vmem>>, vector<1x128xf32>
    %93 = vector.shape_cast %92 : vector<1x128xf32> to vector<128xf32>
    %94 = vector.shape_cast %93 : vector<128xf32> to vector<1x1x128xf32>
    %95 = vector.broadcast %94 : vector<1x1x128xf32> to vector<16x16x128xf32>
    %96 = arith.addf %91, %95 : vector<16x16x128xf32>
    %cst = arith.constant 0.000000e+00 : f32
    %97 = vector.broadcast %cst : f32 to vector<16x16x128xf32>
    %98 = arith.maximumf %96, %97 : vector<16x16x128xf32>
    %99 = vector.shape_cast %98 : vector<16x16x128xf32> to vector<256x128xf32>
    %c0_21 = arith.constant 0 : index
    %c0_22 = arith.constant 0 : index
    %100 = vector.load %arg5[%c0_21, %c0_22] : memref<16x128xf32, #tpu.memory_space<vmem>>, vector<16x128xf32>
    %cst_23 = arith.constant dense<0.000000e+00> : vector<16x256xf32>
    %101 = tpu.matmul %100, %99, %cst_23 {dimension_numbers = #tpu.dot_dimension_numbers<[1], [1], [0], [0], [0, 0, 1, 0], [], []>} : vector<16x128xf32>, vector<256x128xf32>, vector<16x256xf32> -> vector<16x256xf32>
    %c0_24 = arith.constant 0 : index
    %c0_25 = arith.constant 0 : index
    %102 = vector.load %arg6[%c0_24, %c0_25] : memref<16x1xf32, #tpu.memory_space<vmem>>, vector<16x1xf32>
    %103 = vector.broadcast %102 : vector<16x1xf32> to vector<16x256xf32>
    %104 = arith.addf %101, %103 : vector<16x256xf32>
    %cst_26 = arith.constant 0.000000e+00 : f32
    %105 = vector.broadcast %cst_26 : f32 to vector<16x256xf32>
    %106 = arith.maximumf %104, %105 : vector<16x256xf32>
    %c0_27 = arith.constant 0 : index
    %c0_28 = arith.constant 0 : index
    %c0_29 = arith.constant 0 : index
    %107 = vector.load %arg7[%c0_27, %c0_28, %c0_29] : memref<1x16x256xf32, #tpu.memory_space<vmem>>, vector<1x16x256xf32>
    %108 = vector.shape_cast %107 : vector<1x16x256xf32> to vector<16x256xf32>
    %109 = vector.shape_cast %106 : vector<16x256xf32> to vector<1x16x256xf32>
    tpu.vector_store %arg7[%c0_27, %c0_28, %c0_29], %109 {strides = array<i32>} : memref<1x16x256xf32, #tpu.memory_space<vmem>>, vector<1x16x256xf32>,
    return
  }
  func.func @transform_1(%arg0: i32, %arg1: i32) -> (i32, i32, i32) {
    %c0_i32 = arith.constant 0 : i32
    %c0_i32_0 = arith.constant 0 : i32
    %c0_i32_1 = arith.constant 0 : i32
    %c0_i32_2 = arith.constant 0 : i32
    return %c0_i32, %c0_i32_0, %c0_i32_1 : i32, i32, i32
  }
  func.func @transform_2(%arg0: i32, %arg1: i32) -> (i32, i32) {
    %c0_i32 = arith.constant 0 : i32
    %c0_i32_0 = arith.constant 0 : i32
    %c0_i32_1 = arith.constant 0 : i32
    return %c0_i32, %c0_i32_0 : i32, i32
  }
  func.func @transform_3(%arg0: i32, %arg1: i32) -> (i32, i32) {
    %c0_i32 = arith.constant 0 : i32
    %c0_i32_0 = arith.constant 0 : i32
    %c0_i32_1 = arith.constant 0 : i32
    return %c0_i32, %c0_i32_0 : i32, i32
  }
  func.func @transform_4(%arg0: i32, %arg1: i32) -> (i32, i32) {
    %c0_i32 = arith.constant 0 : i32
    %c0_i32_0 = arith.constant 0 : i32
    %c0_i32_1 = arith.constant 0 : i32
    return %c0_i32, %c0_i32_0 : i32, i32
  }
  func.func @transform_5(%arg0: i32, %arg1: i32) -> (i32, i32, i32) {
    %c0_i32 = arith.constant 0 : i32
    %c0_i32_0 = arith.constant 0 : i32
    return %arg0, %c0_i32, %arg1 : i32, i32, i32
  }
}

</mosaic_0001>

<llo_original>
// kernel: tpu_custom_call.1
$region0: #{tpu_custom_call.1}
  #allocation0 [shape = 'u32[]', space=smem, size = 0x4, offset = 0x4, fixed_abs, tag = 'smem constant byte address 0x4 - core index']
  #allocation1 [shape = 'u32[144,128]{1,0:T(1,128)}', space=vmem, size = 0x12000, scoped, tag = 'internal scratch']
  #allocation2 [shape = 'f32[2,18,18,128]{3,2,1,0:T(8,128)}', space=vmem, size = 0x6c000, scoped, tag = 'scratch operand']
  #allocation3 [shape = 's32[2]{0}', space=sflag, size = 0x8, scoped, tag = 'scratch operand']
  #allocation6 [shape = 's32[]', space=sflag, size = 0x4, offset = 0, fixed_abs, tag = 'sflag constant byte address 0x0 - dummy sync flag']
  #allocation7 [shape = 's32[]', space=sflag, size = 0x4, offset = 0, fixed_abs, tag = 'sflag constant byte address 0x0 - dummy sync flag']
  %s0 = inlined_call_operand.vmem [shape: f32[2,18,18,128], index: 0, kind: input, shape index: {}]
  %s1 = inlined_call_operand.vmem [shape: f32[3,3,128], index: 1, kind: input, shape index: {}]
  %s2 = inlined_call_operand.vmem [shape: f32[1,128], index: 2, kind: input, shape index: {}]
  %s3 = inlined_call_operand.vmem [shape: f32[16,128], index: 3, kind: input, shape index: {}]
  %s4 = inlined_call_operand.vmem [shape: f32[16,1], index: 4, kind: input, shape index: {}]
  %s5 = inlined_call_operand.hbm [shape: f32[2,16,256], index: 5, kind: output, shape index: {}]
  %s6 = sld [smem:[#allocation0]]
  $region131: #{tpu_custom_call.1} parent=0
    _
  %s8 = ssub.s32 1, %s6
  %s9 = scalar_select 0, %s8, %s6
  $region1: #{tpu_custom_call.1} parent=0
    #allocation4 [shape = 'u8[32768]{0}', space=vmem, size = 0x8000, scoped, tag = 'output window, operand 0']
    #allocation5 [shape = 's32[2]{0}', space=sflag, size = 0x8, scoped, tag = 'scoped memory for tpu_custom_call.1']
    %10 = vsyncpa [#allocation5], 0
    %s11 = scalar_lea.sflag [#allocation5], 1
    %12 = vsyncpa %s11, 0
    loop: start=0, step=1, limit=4
    $region2: #{tpu_custom_call.1} parent=1 // loop_pre_header
      _
    $region3: #{tpu_custom_call.1} parent=1 // loop_header
      %s14 = sphi 0, %s18
      %p15 = scmp.ge.s32.totalorder %s14, 4
      %s21 = sphi 0, %s33
      %s22 = sphi 0, %s29
      %s23 = sphi 0, %s21
      %s24 = sphi 0, %s22
      %s25 = sphi 0, %s23
      %s26 = sphi 0, %s24
      %s34 = sphi 0, %s34
      %s36 = sphi 0, %s34
      %s37 = sphi 0, %s36
      %s51 = sphi 0, %s37
      %s55 = sphi 0, %s55
      %s57 = sphi 0, %s55
      %s58 = sphi 0, %s57
      %s72 = sphi 0, %s58
      %s76 = sphi 0, %s76
      %s78 = sphi 0, %s76
      %s79 = sphi 0, %s78
      %s93 = sphi 0, %s79
      %s97 = sphi 0, %s97
      %s99 = sphi 0, %s97
      %s100 = sphi 0, %s99
      %s114 = sphi 0, %s100
      %s122 = sphi 0, %s124
      %s125 = sphi 0, %s122
      %s126 = sphi 0, %s125
      %s142 = sphi 0, %s126
    $region4: #{tpu_custom_call.1} parent=1 // loop_header_branch
      %17 = sbr.rel (%p15) target = $region8
    $region5: #{tpu_custom_call.1} parent=1 // loop_body
      %s19 = ssub.s32 %s14, 1
      %s20 = ssub.s32 %s14, 2
      %s27 = sadd.s32 1, %s22
      %p28 = scmp.ge.s32.totalorder %s27, 1
      %s29 = scalar_select %p28, 0, %s27
      %s30 = sadd.s32 1, %s21
      %s31 = scalar_select %p28, %s30, %s21
      %p32 = scmp.ge.s32.totalorder %s31, 2
      %s33 = scalar_select %p32, 0, %s31
      %s35 = sadd.s32 %s34, 1
      %p38 = scmp.eq.s32.totalorder %s14, 1
      %p39 = scmp.ne.s32.totalorder %s34, %s36
      %p40 = scmp.eq.s32.totalorder %s14, 0
      %p41 = por %p39, %p40
      %p42 = scmp.ne.s32.totalorder %s34, %s36
      %p43 = scmp.eq.s32.totalorder %s19, 1
      %p44 = por %p42, %p43
      %p45 = scmp.ne.s32.totalorder %s36, %s37
      %p46 = scmp.eq.s32.totalorder %s19, 0
      %p47 = por %p45, %p46
      %p48 = scmp.ne.s32.totalorder %s36, %s37
      %p49 = scmp.eq.s32.totalorder %s20, 1
      %p50 = por %p48, %p49
      %p52 = scmp.ne.s32.totalorder %s37, %s51
      %p53 = scmp.eq.s32.totalorder %s20, 0
      %p54 = por %p52, %p53
      %s56 = sadd.s32 %s55, 1
      %p59 = scmp.eq.s32.totalorder %s14, 1
      %p60 = scmp.ne.s32.totalorder %s55, %s57
      %p61 = scmp.eq.s32.totalorder %s14, 0
      %p62 = por %p60, %p61
      %p63 = scmp.ne.s32.totalorder %s55, %s57
      %p64 = scmp.eq.s32.totalorder %s19, 1
      %p65 = por %p63, %p64
      %p66 = scmp.ne.s32.totalorder %s57, %s58
      %p67 = scmp.eq.s32.totalorder %s19, 0
      %p68 = por %p66, %p67
      %p69 = scmp.ne.s32.totalorder %s57, %s58
      %p70 = scmp.eq.s32.totalorder %s20, 1
      %p71 = por %p69, %p70
      %p73 = scmp.ne.s32.totalorder %s58, %s72
      %p74 = scmp.eq.s32.totalorder %s20, 0
      %p75 = por %p73, %p74
      %s77 = sadd.s32 %s76, 1
      %p80 = scmp.eq.s32.totalorder %s14, 1
      %p81 = scmp.ne.s32.totalorder %s76, %s78
      %p82 = scmp.eq.s32.totalorder %s14, 0
      %p83 = por %p81, %p82
      %p84 = scmp.ne.s32.totalorder %s76, %s78
      %p85 = scmp.eq.s32.totalorder %s19, 1
      %p86 = por %p84, %p85
      %p87 = scmp.ne.s32.totalorder %s78, %s79
      %p88 = scmp.eq.s32.totalorder %s19, 0
      %p89 = por %p87, %p88
      %p90 = scmp.ne.s32.totalorder %s78, %s79
      %p91 = scmp.eq.s32.totalorder %s20, 1
      %p92 = por %p90, %p91
      %p94 = scmp.ne.s32.totalorder %s79, %s93
      %p95 = scmp.eq.s32.totalorder %s20, 0
      %p96 = por %p94, %p95
      %s98 = sadd.s32 %s97, 1
      %p101 = scmp.eq.s32.totalorder %s14, 1
      %p102 = scmp.ne.s32.totalorder %s97, %s99
      %p103 = scmp.eq.s32.totalorder %s14, 0
      %p104 = por %p102, %p103
      %p105 = scmp.ne.s32.totalorder %s97, %s99
      %p106 = scmp.eq.s32.totalorder %s19, 1
      %p107 = por %p105, %p106
      %p108 = scmp.ne.s32.totalorder %s99, %s100
      %p109 = scmp.eq.s32.totalorder %s19, 0
      %p110 = por %p108, %p109
      %p111 = scmp.ne.s32.totalorder %s99, %s100
      %p112 = scmp.eq.s32.totalorder %s20, 1
      %p113 = por %p111, %p112
      %p115 = scmp.ne.s32.totalorder %s100, %s114
      %p116 = scmp.eq.s32.totalorder %s20, 0
      %p117 = por %p115, %p116
      %s118 = ssub.s32 %s21, %s33
      %s119 = ssub.s32 %s22, %s29
      %s120 = sor.u32 %s118, %s119
      %p121 = scmp.eq.s32.totalorder %s120, 0
      %s123 = sadd.s32 %s122, 1
      %s124 = scalar_select %p121, %s122, %s123
      %p127 = pneg %p121
      %p128 = scmp.eq.s32.totalorder %s14, 1
      %p129 = por %p127, %p128
      %p130 = scmp.ne.s32.totalorder %s122, %s125
      %p131 = scmp.eq.s32.totalorder %s14, 0
      %p132 = por %p130, %p131
      %p133 = scmp.ne.s32.totalorder %s122, %s125
      %p134 = scmp.eq.s32.totalorder %s19, 1
      %p135 = por %p133, %p134
      %p136 = scmp.ne.s32.totalorder %s125, %s126
      %p137 = scmp.eq.s32.totalorder %s19, 0
      %p138 = por %p136, %p137
      %p139 = scmp.ne.s32.totalorder %s125, %s126
      %p140 = scmp.eq.s32.totalorder %s20, 1
      %p141 = por %p139, %p140
      %p143 = scmp.ne.s32.totalorder %s126, %s142
      %p144 = scmp.eq.s32.totalorder %s20, 0
      %p145 = por %p143, %p144
      %p146 = scmp.le.s32.totalorder 1, %s14
      %p147 = scmp.lt.s32.totalorder %s14, 3
      %p148 = pnand %p146, %p147
      %p149 = pneg %p148
      // Predicated region
      $region9: #{tpu_custom_call.1} parent=5 // pred_check
        _
      $region10: #{tpu_custom_call.1} parent=5 // pred_check_branch
        %151 = sbr.rel (%p148) target = $region12
      $region11: #{tpu_custom_call.1} parent=5 // pred_region
        %s152 = ssub.s32 %s14, 1
        // Predicated region
        $region13: #{tpu_custom_call.1} parent=11 // pred_check
          %p153 = pneg %p47
        $region14: #{tpu_custom_call.1} parent=11 // pred_check_branch
          %155 = sbr.rel (%p153) target = $region16
        $region15: #{tpu_custom_call.1} parent=11 // pred_region
          _
        $region16: #{tpu_custom_call.1} parent=11 // pred_fallthru
          _
        // Predicated region
        $region17: #{tpu_custom_call.1} parent=11 // pred_check
          %p156 = pneg %p68
        $region18: #{tpu_custom_call.1} parent=11 // pred_check_branch
          %158 = sbr.rel (%p156) target = $region20
        $region19: #{tpu_custom_call.1} parent=11 // pred_region
          _
        $region20: #{tpu_custom_call.1} parent=11 // pred_fallthru
          _
        // Predicated region
        $region21: #{tpu_custom_call.1} parent=11 // pred_check
          %p159 = pneg %p89
        $region22: #{tpu_custom_call.1} parent=11 // pred_check_branch
          %161 = sbr.rel (%p159) target = $region24
        $region23: #{tpu_custom_call.1} parent=11 // pred_region
          _
        $region24: #{tpu_custom_call.1} parent=11 // pred_fallthru
          _
        // Predicated region
        $region25: #{tpu_custom_call.1} parent=11 // pred_check
          %p162 = pneg %p110
        $region26: #{tpu_custom_call.1} parent=11 // pred_check_branch
          %164 = sbr.rel (%p162) target = $region28
        $region27: #{tpu_custom_call.1} parent=11 // pred_region
          _
        $region28: #{tpu_custom_call.1} parent=11 // pred_fallthru
          _
      $region12: #{tpu_custom_call.1} parent=5 // pred_fallthru
        _
      %p165 = scmp.lt.s32.totalorder %s14, 2
      // Predicated region
      $region29: #{tpu_custom_call.1} parent=5 // pred_check
        %p166 = pneg %p165
      $region30: #{tpu_custom_call.1} parent=5 // pred_check_branch
        %168 = sbr.rel (%p166) target = $region32
      $region31: #{tpu_custom_call.1} parent=5 // pred_region
        _
      $region32: #{tpu_custom_call.1} parent=5 // pred_fallthru
        _
      %p169 = scmp.le.s32.totalorder 1, %s14
      %p170 = scmp.lt.s32.totalorder %s14, 3
      %p171 = pnand %p169, %p170
      %p172 = pneg %p171
      // Predicated region
      $region33: #{tpu_custom_call.1} parent=5 // pred_check
        _
      $region34: #{tpu_custom_call.1} parent=5 // pred_check_branch
        %174 = sbr.rel (%p171) target = $region36
      $region35: #{tpu_custom_call.1} parent=5 // pred_region
        %s175 = ssub.s32 %s14, 1
        %p176 = pneg %p47
        %p177 = pneg %p44
        %p178 = pneg %p68
        %p179 = pneg %p65
        %p180 = pneg %p89
        %p181 = pneg %p86
        %p182 = pneg %p110
        %p183 = pneg %p107
        %p184 = pneg %p138
        %p185 = pneg %p135
        %s186 = sand.u32 %s125, 1
        %s187 = scalar_lea.sflag [#allocation5], %s186
        %s188 = sand.u32 %s125, 1
        %s189 = smul.addr %s188, 32
        %s190 = scalar_lea.vmem [#allocation4], %s189
        %s191 = smul.u32 2, %s24
        %p192 = scmp.lt.s32.totalorder %s24, 0
        %s193 = ssub.s32 0, %s24
        %s194 = scalar_select %p192, %s193, %s24
        %s195 = sand.u32 %s194, 1
        %s196 = ssub.s32 0, %s195
        %s197 = scalar_select %p192, %s196, %s195
        %p198 = scmp.ne.s32.totalorder %s197, 0
        %p199 = scmp.lt.s32.totalorder %s197, 0
        %p200 = pnand %p199, %p198
        %p201 = pneg %p200
        %s202 = sadd.s32 %s197, 2
        %s203 = scalar_select %p201, %s202, %s197
        %p204 = scmp.eq.s32.totalorder %s24, 0
        // Predicated region
        $region37: #{tpu_custom_call.1} parent=35 // pred_check
          %p205 = pneg %p204
        $region38: #{tpu_custom_call.1} parent=35 // pred_check_branch
          %207 = sbr.rel (%p205) target = $region40
        $region39: #{tpu_custom_call.1} parent=35 // pred_region
          %s208 = smul.u32 %s24, 16
          %s209 = smul.u32 %s208, 24
          %s210 = smul.u32 %s23, 432
          %s211 = sadd.s32 %s209, %s210
          %s212 = scalar_lea.vmem %s0, %s211
          %s213 = smul.u32 %s203, 432
          %s214 = scalar_lea.vmem [#allocation2], %s213
          %s215 = scalar_lea.sflag [#allocation3], %s203
          %p217 = scmp.lt.u32.totalorder 18, 8
          %p218 = pneg %p217
          // Predicated region
          $region41: #{tpu_custom_call.1} parent=39 // pred_check
            _
          $region42: #{tpu_custom_call.1} parent=39 // pred_check_branch
            %220 = sbr.rel (%p217) target = $region44
          $region43: #{tpu_custom_call.1} parent=39 // pred_region
            %s270 = sand.u32 18, 7
            %p271 = scmp.eq.s32.totalorder %s270, 0
            %p272 = pneg %p271
            // Predicated region
            $region56: #{tpu_custom_call.1} parent=43 // pred_check
              _
            $region57: #{tpu_custom_call.1} parent=43 // pred_check_branch
              %274 = sbr.rel (%p271) target = $region59
            $region58: #{tpu_custom_call.1} parent=43 // pred_region
              %s275 = sand.u32 18, 7
              %s276 = ssub.s32 18, %s275
              %s277 = scalar_lea.vmem %s212, %s276
              %s278 = ssub.s32 18, %s275
              %s279 = scalar_lea.vmem %s214, %s278 [#allocation2]
              loop: start=0, step=1, limit=1
              $region60: #{tpu_custom_call.1} parent=58 // loop_pre_header
                _
              $region61: #{tpu_custom_call.1} parent=58 // loop_header
                %s281 = sphi 0, %s285
                %p282 = scmp.ge.s32.totalorder %s281, 1
                %s286 = sphi %s212, %s212
                %s287 = sphi %s214, %s214
              $region62: #{tpu_custom_call.1} parent=58 // loop_header_branch
                %284 = sbr.rel (%p282) target = $region66
              $region63: #{tpu_custom_call.1} parent=58 // loop_body
                %v288 = vld [vmem:[%s286] sm:$0xff]
                %289 = vst [vmem:[%s287] sm:$0xff] %v288
                %v290 = vld [vmem:[%s286 + $0x8] sm:$0xff]
                %291 = vst [vmem:[%s287 + $0x8] sm:$0xff] %v290
                %v292 = vld [vmem:[%s286 + $0x18] sm:$0xff]
                %293 = vst [vmem:[%s287 + $0x18] sm:$0xff] %v292
                %v294 = vld [vmem:[%s286 + $0x20] sm:$0xff]
                %295 = vst [vmem:[%s287 + $0x20] sm:$0xff] %v294
                %v296 = vld [vmem:[%s286 + $0x30] sm:$0xff]
                %297 = vst [vmem:[%s287 + $0x30] sm:$0xff] %v296
                %v298 = vld [vmem:[%s286 + $0x38] sm:$0xff]
                %299 = vst [vmem:[%s287 + $0x38] sm:$0xff] %v298
                %v300 = vld [vmem:[%s286 + $0x48] sm:$0xff]
                %301 = vst [vmem:[%s287 + $0x48] sm:$0xff] %v300
                %v302 = vld [vmem:[%s286 + $0x50] sm:$0xff]
                %303 = vst [vmem:[%s287 + $0x50] sm:$0xff] %v302
                %v304 = vld [vmem:[%s286 + $0x60] sm:$0xff]
                %305 = vst [vmem:[%s287 + $0x60] sm:$0xff] %v304
                %v306 = vld [vmem:[%s286 + $0x68] sm:$0xff]
                %307 = vst [vmem:[%s287 + $0x68] sm:$0xff] %v306
                %v308 = vld [vmem:[%s286 + $0x78] sm:$0xff]
                %309 = vst [vmem:[%s287 + $0x78] sm:$0xff] %v308
                %v310 = vld [vmem:[%s286 + $0x80] sm:$0xff]
                %311 = vst [vmem:[%s287 + $0x80] sm:$0xff] %v310
                %v312 = vld [vmem:[%s286 + $0x90] sm:$0xff]
                %313 = vst [vmem:[%s287 + $0x90] sm:$0xff] %v312
                %v314 = vld [vmem:[%s286 + $0x98] sm:$0xff]
                %315 = vst [vmem:[%s287 + $0x98] sm:$0xff] %v314
                %v316 = vld [vmem:[%s286 + $0xa8] sm:$0xff]
                %317 = vst [vmem:[%s287 + $0xa8] sm:$0xff] %v316
                %v318 = vld [vmem:[%s286 + $0xb0] sm:$0xff]
                %319 = vst [vmem:[%s287 + $0xb0] sm:$0xff] %v318
                %v320 = vld [vmem:[%s286 + $0xc0] sm:$0xff]
                %321 = vst [vmem:[%s287 + $0xc0] sm:$0xff] %v320
                %v322 = vld [vmem:[%s286 + $0xc8] sm:$0xff]
                %323 = vst [vmem:[%s287 + $0xc8] sm:$0xff] %v322
                %v324 = vld [vmem:[%s286 + $0xd8] sm:$0xff]
                %325 = vst [vmem:[%s287 + $0xd8] sm:$0xff] %v324
                %v326 = vld [vmem:[%s286 + $0xe0] sm:$0xff]
                %327 = vst [vmem:[%s287 + $0xe0] sm:$0xff] %v326
                %v328 = vld [vmem:[%s286 + $0xf0] sm:$0xff]
                %329 = vst [vmem:[%s287 + $0xf0] sm:$0xff] %v328
                %v330 = vld [vmem:[%s286 + $0xf8] sm:$0xff]
                %331 = vst [vmem:[%s287 + $0xf8] sm:$0xff] %v330
                %v332 = vld [vmem:[%s286 + $0x108] sm:$0xff]
                %333 = vst [vmem:[%s287 + $0x108] sm:$0xff] %v332
                %v334 = vld [vmem:[%s286 + $0x110] sm:$0xff]
                %335 = vst [vmem:[%s287 + $0x110] sm:$0xff] %v334
                %v336 = vld [vmem:[%s286 + $0x120] sm:$0xff]
                %337 = vst [vmem:[%s287 + $0x120] sm:$0xff] %v336
                %v338 = vld [vmem:[%s286 + $0x128] sm:$0xff]
                %339 = vst [vmem:[%s287 + $0x128] sm:$0xff] %v338
                %v340 = vld [vmem:[%s286 + $0x138] sm:$0xff]
                %341 = vst [vmem:[%s287 + $0x138] sm:$0xff] %v340
                %v342 = vld [vmem:[%s286 + $0x140] sm:$0xff]
                %343 = vst [vmem:[%s287 + $0x140] sm:$0xff] %v342
                %v344 = vld [vmem:[%s286 + $0x150] sm:$0xff]
                %345 = vst [vmem:[%s287 + $0x150] sm:$0xff] %v344
                %v346 = vld [vmem:[%s286 + $0x158] sm:$0xff]
                %347 = vst [vmem:[%s287 + $0x158] sm:$0xff] %v346
                %v348 = vld [vmem:[%s286 + $0x168] sm:$0xff]
                %349 = vst [vmem:[%s287 + $0x168] sm:$0xff] %v348
                %v350 = vld [vmem:[%s286 + $0x170] sm:$0xff]
                %351 = vst [vmem:[%s287 + $0x170] sm:$0xff] %v350
                %v352 = vld [vmem:[%s286 + $0x180] sm:$0xff]
                %353 = vst [vmem:[%s287 + $0x180] sm:$0xff] %v352
                %v354 = vld [vmem:[%s286 + $0x188] sm:$0xff]
                %355 = vst [vmem:[%s287 + $0x188] sm:$0xff] %v354
                %v356 = vld [vmem:[%s286 + $0x198] sm:$0xff]
                %357 = vst [vmem:[%s287 + $0x198] sm:$0xff] %v356
                %v358 = vld [vmem:[%s286 + $0x1a0] sm:$0xff]
                %359 = vst [vmem:[%s287 + $0x1a0] sm:$0xff] %v358
              $region64: #{tpu_custom_call.1} parent=58 // loop_footer
                %s285 = sadd.s32 1, %s281
              $region65: #{tpu_custom_call.1} parent=58 // loop_footer_branch
                %280 = sbr.rel target = $region61
              $region66: #{tpu_custom_call.1} parent=58 // loop_exit
                _
              %s360 = sshll.u32 1, %s275
              %s361 = ssub.s32 %s360, 1
              loop: start=0, step=1, limit=1
              $region67: #{tpu_custom_call.1} parent=58 // loop_pre_header
                _
              $region68: #{tpu_custom_call.1} parent=58 // loop_header
                %s363 = sphi 0, %s367
                %p364 = scmp.ge.s32.totalorder %s363, 1
                %s368 = sphi %s277, %s277
                %s369 = sphi %s279, %s279
              $region69: #{tpu_custom_call.1} parent=58 // loop_header_branch
                %366 = sbr.rel (%p364) target = $region73
              $region70: #{tpu_custom_call.1} parent=58 // loop_body
                %v370 = vld [vmem:[%s368] sm:%s361]
                %371 = vst [vmem:[%s369] sm:%s361] %v370
                %v372 = vld [vmem:[%s368 + $0x18] sm:%s361]
                %373 = vst [vmem:[%s369 + $0x18] sm:%s361] %v372
                %v374 = vld [vmem:[%s368 + $0x30] sm:%s361]
                %375 = vst [vmem:[%s369 + $0x30] sm:%s361] %v374
                %v376 = vld [vmem:[%s368 + $0x48] sm:%s361]
                %377 = vst [vmem:[%s369 + $0x48] sm:%s361] %v376
                %v378 = vld [vmem:[%s368 + $0x60] sm:%s361]
                %379 = vst [vmem:[%s369 + $0x60] sm:%s361] %v378
                %v380 = vld [vmem:[%s368 + $0x78] sm:%s361]
                %381 = vst [vmem:[%s369 + $0x78] sm:%s361] %v380
                %v382 = vld [vmem:[%s368 + $0x90] sm:%s361]
                %383 = vst [vmem:[%s369 + $0x90] sm:%s361] %v382
                %v384 = vld [vmem:[%s368 + $0xa8] sm:%s361]
                %385 = vst [vmem:[%s369 + $0xa8] sm:%s361] %v384
                %v386 = vld [vmem:[%s368 + $0xc0] sm:%s361]
                %387 = vst [vmem:[%s369 + $0xc0] sm:%s361] %v386
                %v388 = vld [vmem:[%s368 + $0xd8] sm:%s361]
                %389 = vst [vmem:[%s369 + $0xd8] sm:%s361] %v388
                %v390 = vld [vmem:[%s368 + $0xf0] sm:%s361]
                %391 = vst [vmem:[%s369 + $0xf0] sm:%s361] %v390
                %v392 = vld [vmem:[%s368 + $0x108] sm:%s361]
                %393 = vst [vmem:[%s369 + $0x108] sm:%s361] %v392
                %v394 = vld [vmem:[%s368 + $0x120] sm:%s361]
                %395 = vst [vmem:[%s369 + $0x120] sm:%s361] %v394
                %v396 = vld [vmem:[%s368 + $0x138] sm:%s361]
                %397 = vst [vmem:[%s369 + $0x138] sm:%s361] %v396
                %v398 = vld [vmem:[%s368 + $0x150] sm:%s361]
                %399 = vst [vmem:[%s369 + $0x150] sm:%s361] %v398
                %v400 = vld [vmem:[%s368 + $0x168] sm:%s361]
                %401 = vst [vmem:[%s369 + $0x168] sm:%s361] %v400
                %v402 = vld [vmem:[%s368 + $0x180] sm:%s361]
                %403 = vst [vmem:[%s369 + $0x180] sm:%s361] %v402
                %v404 = vld [vmem:[%s368 + $0x198] sm:%s361]
                %405 = vst [vmem:[%s369 + $0x198] sm:%s361] %v404
              $region71: #{tpu_custom_call.1} parent=58 // loop_footer
                %s367 = sadd.s32 1, %s363
              $region72: #{tpu_custom_call.1} parent=58 // loop_footer_branch
                %362 = sbr.rel target = $region68
              $region73: #{tpu_custom_call.1} parent=58 // loop_exit
                _
            $region59: #{tpu_custom_call.1} parent=43 // pred_fallthru
              _
          $region44: #{tpu_custom_call.1} parent=39 // pred_fallthru
            _
          // Predicated region
          $region45: #{tpu_custom_call.1} parent=39 // pred_check
            %p221 = pneg %p217
          $region46: #{tpu_custom_call.1} parent=39 // pred_check_branch
            %223 = sbr.rel (%p221) target = $region48
          $region47: #{tpu_custom_call.1} parent=39 // pred_region
            %s224 = sshll.u32 1, 18
            %s225 = ssub.s32 %s224, 1
            loop: start=0, step=1, limit=1
            $region49: #{tpu_custom_call.1} parent=47 // loop_pre_header
              _
            $region50: #{tpu_custom_call.1} parent=47 // loop_header
              %s227 = sphi 0, %s231
              %p228 = scmp.ge.s32.totalorder %s227, 1
              %s232 = sphi %s212, %s212
              %s233 = sphi %s214, %s214
            $region51: #{tpu_custom_call.1} parent=47 // loop_header_branch
              %230 = sbr.rel (%p228) target = $region55
            $region52: #{tpu_custom_call.1} parent=47 // loop_body
              %v234 = vld [vmem:[%s232] sm:%s225]
              %235 = vst [vmem:[%s233] sm:%s225] %v234
              %v236 = vld [vmem:[%s232 + $0x18] sm:%s225]
              %237 = vst [vmem:[%s233 + $0x18] sm:%s225] %v236
              %v238 = vld [vmem:[%s232 + $0x30] sm:%s225]
              %239 = vst [vmem:[%s233 + $0x30] sm:%s225] %v238
              %v240 = vld [vmem:[%s232 + $0x48] sm:%s225]
              %241 = vst [vmem:[%s233 + $0x48] sm:%s225] %v240
              %v242 = vld [vmem:[%s232 + $0x60] sm:%s225]
              %243 = vst [vmem:[%s233 + $0x60] sm:%s225] %v242
              %v244 = vld [vmem:[%s232 + $0x78] sm:%s225]
              %245 = vst [vmem:[%s233 + $0x78] sm:%s225] %v244
              %v246 = vld [vmem:[%s232 + $0x90] sm:%s225]
              %247 = vst [vmem:[%s233 + $0x90] sm:%s225] %v246
              %v248 = vld [vmem:[%s232 + $0xa8] sm:%s225]
              %249 = vst [vmem:[%s233 + $0xa8] sm:%s225] %v248
              %v250 = vld [vmem:[%s232 + $0xc0] sm:%s225]
              %251 = vst [vmem:[%s233 + $0xc0] sm:%s225] %v250
              %v252 = vld [vmem:[%s232 + $0xd8] sm:%s225]
              %253 = vst [vmem:[%s233 + $0xd8] sm:%s225] %v252
              %v254 = vld [vmem:[%s232 + $0xf0] sm:%s225]
              %255 = vst [vmem:[%s233 + $0xf0] sm:%s225] %v254
              %v256 = vld [vmem:[%s232 + $0x108] sm:%s225]
              %257 = vst [vmem:[%s233 + $0x108] sm:%s225] %v256
              %v258 = vld [vmem:[%s232 + $0x120] sm:%s225]
              %259 = vst [vmem:[%s233 + $0x120] sm:%s225] %v258
              %v260 = vld [vmem:[%s232 + $0x138] sm:%s225]
              %261 = vst [vmem:[%s233 + $0x138] sm:%s225] %v260
              %v262 = vld [vmem:[%s232 + $0x150] sm:%s225]
              %263 = vst [vmem:[%s233 + $0x150] sm:%s225] %v262
              %v264 = vld [vmem:[%s232 + $0x168] sm:%s225]
              %265 = vst [vmem:[%s233 + $0x168] sm:%s225] %v264
              %v266 = vld [vmem:[%s232 + $0x180] sm:%s225]
              %267 = vst [vmem:[%s233 + $0x180] sm:%s225] %v266
              %v268 = vld [vmem:[%s232 + $0x198] sm:%s225]
              %269 = vst [vmem:[%s233 + $0x198] sm:%s225] %v268
            $region53: #{tpu_custom_call.1} parent=47 // loop_footer
              %s231 = sadd.s32 1, %s227
            $region54: #{tpu_custom_call.1} parent=47 // loop_footer_branch
              %226 = sbr.rel target = $region50
            $region55: #{tpu_custom_call.1} parent=47 // loop_exit
              _
          $region48: #{tpu_custom_call.1} parent=39 // pred_fallthru
            _
          // Predicated region
          $region74: #{tpu_custom_call.1} parent=39 // pred_check
            _
          $region75: #{tpu_custom_call.1} parent=39 // pred_check_branch
            %408 = sbr.rel (0) target = $region77
          $region76: #{tpu_custom_call.1} parent=39 // pred_region
            %409 = vsyncadd %s215, 5184
          $region77: #{tpu_custom_call.1} parent=39 // pred_fallthru
            _
        $region40: #{tpu_custom_call.1} parent=35 // pred_fallthru
          _
        %s410 = sadd.s32 %s24, 1
        %p411 = scmp.lt.s32.totalorder %s410, 1
        // Predicated region
        $region78: #{tpu_custom_call.1} parent=35 // pred_check
          %p412 = pneg %p411
        $region79: #{tpu_custom_call.1} parent=35 // pred_check_branch
          %414 = sbr.rel (%p412) target = $region81
        $region80: #{tpu_custom_call.1} parent=35 // pred_region
          %p415 = scmp.lt.s32.totalorder %s410, 0
          %s416 = scalar_select %p415, %s410, 0
          %s417 = ssub.s32 1, %s203
          %s418 = smul.u32 %s416, 16
          %s419 = smul.u32 %s418, 24
          %s420 = smul.u32 %s23, 432
          %s421 = sadd.s32 %s419, %s420
          %s422 = scalar_lea.vmem %s0, %s421
          %s423 = smul.u32 %s417, 432
          %s424 = scalar_lea.vmem [#allocation2], %s423
          %s425 = scalar_lea.sflag [#allocation3], %s417
          %p427 = scmp.lt.u32.totalorder 18, 8
          %p428 = pneg %p427
          // Predicated region
          $region82: #{tpu_custom_call.1} parent=80 // pred_check
            _
          $region83: #{tpu_custom_call.1} parent=80 // pred_check_branch
            %430 = sbr.rel (%p427) target = $region85
          $region84: #{tpu_custom_call.1} parent=80 // pred_region
            %s480 = sand.u32 18, 7
            %p481 = scmp.eq.s32.totalorder %s480, 0
            %p482 = pneg %p481
            // Predicated region
            $region97: #{tpu_custom_call.1} parent=84 // pred_check
              _
            $region98: #{tpu_custom_call.1} parent=84 // pred_check_branch
              %484 = sbr.rel (%p481) target = $region100
            $region99: #{tpu_custom_call.1} parent=84 // pred_region
              %s485 = sand.u32 18, 7
              %s486 = ssub.s32 18, %s485
              %s487 = scalar_lea.vmem %s422, %s486
              %s488 = ssub.s32 18, %s485
              %s489 = scalar_lea.vmem %s424, %s488 [#allocation2]
              loop: start=0, step=1, limit=1
              $region101: #{tpu_custom_call.1} parent=99 // loop_pre_header
                _
              $region102: #{tpu_custom_call.1} parent=99 // loop_header
                %s491 = sphi 0, %s495
                %p492 = scmp.ge.s32.totalorder %s491, 1
                %s496 = sphi %s422, %s422
                %s497 = sphi %s424, %s424
              $region103: #{tpu_custom_call.1} parent=99 // loop_header_branch
                %494 = sbr.rel (%p492) target = $region107
              $region104: #{tpu_custom_call.1} parent=99 // loop_body
                %v498 = vld [vmem:[%s496] sm:$0xff]
                %499 = vst [vmem:[%s497] sm:$0xff] %v498
                %v500 = vld [vmem:[%s496 + $0x8] sm:$0xff]
                %501 = vst [vmem:[%s497 + $0x8] sm:$0xff] %v500
                %v502 = vld [vmem:[%s496 + $0x18] sm:$0xff]
                %503 = vst [vmem:[%s497 + $0x18] sm:$0xff] %v502
                %v504 = vld [vmem:[%s496 + $0x20] sm:$0xff]
                %505 = vst [vmem:[%s497 + $0x20] sm:$0xff] %v504
                %v506 = vld [vmem:[%s496 + $0x30] sm:$0xff]
                %507 = vst [vmem:[%s497 + $0x30] sm:$0xff] %v506
                %v508 = vld [vmem:[%s496 + $0x38] sm:$0xff]
                %509 = vst [vmem:[%s497 + $0x38] sm:$0xff] %v508
                %v510 = vld [vmem:[%s496 + $0x48] sm:$0xff]
                %511 = vst [vmem:[%s497 + $0x48] sm:$0xff] %v510
                %v512 = vld [vmem:[%s496 + $0x50] sm:$0xff]
                %513 = vst [vmem:[%s497 + $0x50] sm:$0xff] %v512
                %v514 = vld [vmem:[%s496 + $0x60] sm:$0xff]
                %515 = vst [vmem:[%s497 + $0x60] sm:$0xff] %v514
                %v516 = vld [vmem:[%s496 + $0x68] sm:$0xff]
                %517 = vst [vmem:[%s497 + $0x68] sm:$0xff] %v516
                %v518 = vld [vmem:[%s496 + $0x78] sm:$0xff]
                %519 = vst [vmem:[%s497 + $0x78] sm:$0xff] %v518
                %v520 = vld [vmem:[%s496 + $0x80] sm:$0xff]
                %521 = vst [vmem:[%s497 + $0x80] sm:$0xff] %v520
                %v522 = vld [vmem:[%s496 + $0x90] sm:$0xff]
                %523 = vst [vmem:[%s497 + $0x90] sm:$0xff] %v522
                %v524 = vld [vmem:[%s496 + $0x98] sm:$0xff]
                %525 = vst [vmem:[%s497 + $0x98] sm:$0xff] %v524
                %v526 = vld [vmem:[%s496 + $0xa8] sm:$0xff]
                %527 = vst [vmem:[%s497 + $0xa8] sm:$0xff] %v526
                %v528 = vld [vmem:[%s496 + $0xb0] sm:$0xff]
                %529 = vst [vmem:[%s497 + $0xb0] sm:$0xff] %v528
                %v530 = vld [vmem:[%s496 + $0xc0] sm:$0xff]
                %531 = vst [vmem:[%s497 + $0xc0] sm:$0xff] %v530
                %v532 = vld [vmem:[%s496 + $0xc8] sm:$0xff]
                %533 = vst [vmem:[%s497 + $0xc8] sm:$0xff] %v532
                %v534 = vld [vmem:[%s496 + $0xd8] sm:$0xff]
                %535 = vst [vmem:[%s497 + $0xd8] sm:$0xff] %v534
                %v536 = vld [vmem:[%s496 + $0xe0] sm:$0xff]
                %537 = vst [vmem:[%s497 + $0xe0] sm:$0xff] %v536
                %v538 = vld [vmem:[%s496 + $0xf0] sm:$0xff]
                %539 = vst [vmem:[%s497 + $0xf0] sm:$0xff] %v538
                %v540 = vld [vmem:[%s496 + $0xf8] sm:$0xff]
                %541 = vst [vmem:[%s497 + $0xf8] sm:$0xff] %v540
                %v542 = vld [vmem:[%s496 + $0x108] sm:$0xff]
                %543 = vst [vmem:[%s497 + $0x108] sm:$0xff] %v542
                %v544 = vld [vmem:[%s496 + $0x110] sm:$0xff]
                %545 = vst [vmem:[%s497 + $0x110] sm:$0xff] %v544
                %v546 = vld [vmem:[%s496 + $0x120] sm:$0xff]
                %547 = vst [vmem:[%s497 + $0x120] sm:$0xff] %v546
                %v548 = vld [vmem:[%s496 + $0x128] sm:$0xff]
                %549 = vst [vmem:[%s497 + $0x128] sm:$0xff] %v548
                %v550 = vld [vmem:[%s496 + $0x138] sm:$0xff]
                %551 = vst [vmem:[%s497 + $0x138] sm:$0xff] %v550
                %v552 = vld [vmem:[%s496 + $0x140] sm:$0xff]
                %553 = vst [vmem:[%s497 + $0x140] sm:$0xff] %v552
                %v554 = vld [vmem:[%s496 + $0x150] sm:$0xff]
                %555 = vst [vmem:[%s497 + $0x150] sm:$0xff] %v554
                %v556 = vld [vmem:[%s496 + $0x158] sm:$0xff]
                %557 = vst [vmem:[%s497 + $0x158] sm:$0xff] %v556
                %v558 = vld [vmem:[%s496 + $0x168] sm:$0xff]
                %559 = vst [vmem:[%s497 + $0x168] sm:$0xff] %v558
                %v560 = vld [vmem:[%s496 + $0x170] sm:$0xff]
                %561 = vst [vmem:[%s497 + $0x170] sm:$0xff] %v560
                %v562 = vld [vmem:[%s496 + $0x180] sm:$0xff]
                %563 = vst [vmem:[%s497 + $0x180] sm:$0xff] %v562
                %v564 = vld [vmem:[%s496 + $0x188] sm:$0xff]
                %565 = vst [vmem:[%s497 + $0x188] sm:$0xff] %v564
                %v566 = vld [vmem:[%s496 + $0x198] sm:$0xff]
                %567 = vst [vmem:[%s497 + $0x198] sm:$0xff] %v566
                %v568 = vld [vmem:[%s496 + $0x1a0] sm:$0xff]
                %569 = vst [vmem:[%s497 + $0x1a0] sm:$0xff] %v568
              $region105: #{tpu_custom_call.1} parent=99 // loop_footer
                %s495 = sadd.s32 1, %s491
              $region106: #{tpu_custom_call.1} parent=99 // loop_footer_branch
                %490 = sbr.rel target = $region102
              $region107: #{tpu_custom_call.1} parent=99 // loop_exit
                _
              %s570 = sshll.u32 1, %s485
              %s571 = ssub.s32 %s570, 1
              loop: start=0, step=1, limit=1
              $region108: #{tpu_custom_call.1} parent=99 // loop_pre_header
                _
              $region109: #{tpu_custom_call.1} parent=99 // loop_header
                %s573 = sphi 0, %s577
                %p574 = scmp.ge.s32.totalorder %s573, 1
                %s578 = sphi %s487, %s487
                %s579 = sphi %s489, %s489
              $region110: #{tpu_custom_call.1} parent=99 // loop_header_branch
                %576 = sbr.rel (%p574) target = $region114
              $region111: #{tpu_custom_call.1} parent=99 // loop_body
                %v580 = vld [vmem:[%s578] sm:%s571]
                %581 = vst [vmem:[%s579] sm:%s571] %v580
                %v582 = vld [vmem:[%s578 + $0x18] sm:%s571]
                %583 = vst [vmem:[%s579 + $0x18] sm:%s571] %v582
                %v584 = vld [vmem:[%s578 + $0x30] sm:%s571]
                %585 = vst [vmem:[%s579 + $0x30] sm:%s571] %v584
                %v586 = vld [vmem:[%s578 + $0x48] sm:%s571]
                %587 = vst [vmem:[%s579 + $0x48] sm:%s571] %v586
                %v588 = vld [vmem:[%s578 + $0x60] sm:%s571]
                %589 = vst [vmem:[%s579 + $0x60] sm:%s571] %v588
                %v590 = vld [vmem:[%s578 + $0x78] sm:%s571]
                %591 = vst [vmem:[%s579 + $0x78] sm:%s571] %v590
                %v592 = vld [vmem:[%s578 + $0x90] sm:%s571]
                %593 = vst [vmem:[%s579 + $0x90] sm:%s571] %v592
                %v594 = vld [vmem:[%s578 + $0xa8] sm:%s571]
                %595 = vst [vmem:[%s579 + $0xa8] sm:%s571] %v594
                %v596 = vld [vmem:[%s578 + $0xc0] sm:%s571]
                %597 = vst [vmem:[%s579 + $0xc0] sm:%s571] %v596
                %v598 = vld [vmem:[%s578 + $0xd8] sm:%s571]
                %599 = vst [vmem:[%s579 + $0xd8] sm:%s571] %v598
                %v600 = vld [vmem:[%s578 + $0xf0] sm:%s571]
                %601 = vst [vmem:[%s579 + $0xf0] sm:%s571] %v600
                %v602 = vld [vmem:[%s578 + $0x108] sm:%s571]
                %603 = vst [vmem:[%s579 + $0x108] sm:%s571] %v602
                %v604 = vld [vmem:[%s578 + $0x120] sm:%s571]
                %605 = vst [vmem:[%s579 + $0x120] sm:%s571] %v604
                %v606 = vld [vmem:[%s578 + $0x138] sm:%s571]
                %607 = vst [vmem:[%s579 + $0x138] sm:%s571] %v606
                %v608 = vld [vmem:[%s578 + $0x150] sm:%s571]
                %609 = vst [vmem:[%s579 + $0x150] sm:%s571] %v608
                %v610 = vld [vmem:[%s578 + $0x168] sm:%s571]
                %611 = vst [vmem:[%s579 + $0x168] sm:%s571] %v610
                %v612 = vld [vmem:[%s578 + $0x180] sm:%s571]
                %613 = vst [vmem:[%s579 + $0x180] sm:%s571] %v612
                %v614 = vld [vmem:[%s578 + $0x198] sm:%s571]
                %615 = vst [vmem:[%s579 + $0x198] sm:%s571] %v614
              $region112: #{tpu_custom_call.1} parent=99 // loop_footer
                %s577 = sadd.s32 1, %s573
              $region113: #{tpu_custom_call.1} parent=99 // loop_footer_branch
                %572 = sbr.rel target = $region109
              $region114: #{tpu_custom_call.1} parent=99 // loop_exit
                _
            $region100: #{tpu_custom_call.1} parent=84 // pred_fallthru
              _
          $region85: #{tpu_custom_call.1} parent=80 // pred_fallthru
            _
          // Predicated region
          $region86: #{tpu_custom_call.1} parent=80 // pred_check
            %p431 = pneg %p427
          $region87: #{tpu_custom_call.1} parent=80 // pred_check_branch
            %433 = sbr.rel (%p431) target = $region89
          $region88: #{tpu_custom_call.1} parent=80 // pred_region
            %s434 = sshll.u32 1, 18
            %s435 = ssub.s32 %s434, 1
            loop: start=0, step=1, limit=1
            $region90: #{tpu_custom_call.1} parent=88 // loop_pre_header
              _
            $region91: #{tpu_custom_call.1} parent=88 // loop_header
              %s437 = sphi 0, %s441
              %p438 = scmp.ge.s32.totalorder %s437, 1
              %s442 = sphi %s422, %s422
              %s443 = sphi %s424, %s424
            $region92: #{tpu_custom_call.1} parent=88 // loop_header_branch
              %440 = sbr.rel (%p438) target = $region96
            $region93: #{tpu_custom_call.1} parent=88 // loop_body
              %v444 = vld [vmem:[%s442] sm:%s435]
              %445 = vst [vmem:[%s443] sm:%s435] %v444
              %v446 = vld [vmem:[%s442 + $0x18] sm:%s435]
              %447 = vst [vmem:[%s443 + $0x18] sm:%s435] %v446
              %v448 = vld [vmem:[%s442 + $0x30] sm:%s435]
              %449 = vst [vmem:[%s443 + $0x30] sm:%s435] %v448
              %v450 = vld [vmem:[%s442 + $0x48] sm:%s435]
              %451 = vst [vmem:[%s443 + $0x48] sm:%s435] %v450
              %v452 = vld [vmem:[%s442 + $0x60] sm:%s435]
              %453 = vst [vmem:[%s443 + $0x60] sm:%s435] %v452
              %v454 = vld [vmem:[%s442 + $0x78] sm:%s435]
              %455 = vst [vmem:[%s443 + $0x78] sm:%s435] %v454
              %v456 = vld [vmem:[%s442 + $0x90] sm:%s435]
              %457 = vst [vmem:[%s443 + $0x90] sm:%s435] %v456
              %v458 = vld [vmem:[%s442 + $0xa8] sm:%s435]
              %459 = vst [vmem:[%s443 + $0xa8] sm:%s435] %v458
              %v460 = vld [vmem:[%s442 + $0xc0] sm:%s435]
              %461 = vst [vmem:[%s443 + $0xc0] sm:%s435] %v460
              %v462 = vld [vmem:[%s442 + $0xd8] sm:%s435]
              %463 = vst [vmem:[%s443 + $0xd8] sm:%s435] %v462
              %v464 = vld [vmem:[%s442 + $0xf0] sm:%s435]
              %465 = vst [vmem:[%s443 + $0xf0] sm:%s435] %v464
              %v466 = vld [vmem:[%s442 + $0x108] sm:%s435]
              %467 = vst [vmem:[%s443 + $0x108] sm:%s435] %v466
              %v468 = vld [vmem:[%s442 + $0x120] sm:%s435]
              %469 = vst [vmem:[%s443 + $0x120] sm:%s435] %v468
              %v470 = vld [vmem:[%s442 + $0x138] sm:%s435]
              %471 = vst [vmem:[%s443 + $0x138] sm:%s435] %v470
              %v472 = vld [vmem:[%s442 + $0x150] sm:%s435]
              %473 = vst [vmem:[%s443 + $0x150] sm:%s435] %v472
              %v474 = vld [vmem:[%s442 + $0x168] sm:%s435]
              %475 = vst [vmem:[%s443 + $0x168] sm:%s435] %v474
              %v476 = vld [vmem:[%s442 + $0x180] sm:%s435]
              %477 = vst [vmem:[%s443 + $0x180] sm:%s435] %v476
              %v478 = vld [vmem:[%s442 + $0x198] sm:%s435]
              %479 = vst [vmem:[%s443 + $0x198] sm:%s435] %v478
            $region94: #{tpu_custom_call.1} parent=88 // loop_footer
              %s441 = sadd.s32 1, %s437
            $region95: #{tpu_custom_call.1} parent=88 // loop_footer_branch
              %436 = sbr.rel target = $region91
            $region96: #{tpu_custom_call.1} parent=88 // loop_exit
              _
          $region89: #{tpu_custom_call.1} parent=80 // pred_fallthru
            _
          // Predicated region
          $region115: #{tpu_custom_call.1} parent=80 // pred_check
            _
          $region116: #{tpu_custom_call.1} parent=80 // pred_check_branch
            %618 = sbr.rel (0) target = $region118
          $region117: #{tpu_custom_call.1} parent=80 // pred_region
            %619 = vsyncadd %s425, 5184
          $region118: #{tpu_custom_call.1} parent=80 // pred_fallthru
            _
        $region81: #{tpu_custom_call.1} parent=35 // pred_fallthru
          _
        %s620 = smul.u32 %s203, 432
        %s621 = scalar_lea.vmem [#allocation2], %s620
        %s622 = scalar_lea.sflag [#allocation3], %s203
        %s623 = smul.u32 18, 18
        %s624 = smul.u32 %s623, 1
        %s625 = sshll.u32 %s624, 4
        %626 = dma.done %s622, %s625
        %v627 = vld [vmem:[%s621] sm:$0xff]
        %v628 = vld [vmem:[%s621 + $0x8] sm:$0xff]
        %v629 = vld [vmem:[%s621 + $0x10] sm:$0x3]
        %v630 = vld [vmem:[%s621 + $0x18] sm:$0xff]
        %v631 = vld [vmem:[%s621 + $0x20] sm:$0xff]
        %v632 = vld [vmem:[%s621 + $0x28] sm:$0x3]
        %v633 = vld [vmem:[%s621 + $0x30] sm:$0xff]
        %v634 = vld [vmem:[%s621 + $0x38] sm:$0xff]
        %v635 = vld [vmem:[%s621 + $0x40] sm:$0x3]
        %v636 = vld [vmem:[%s621 + $0x48] sm:$0xff]
        %v637 = vld [vmem:[%s621 + $0x50] sm:$0xff]
        %v638 = vld [vmem:[%s621 + $0x58] sm:$0x3]
        %v639 = vld [vmem:[%s621 + $0x60] sm:$0xff]
        %v640 = vld [vmem:[%s621 + $0x68] sm:$0xff]
        %v641 = vld [vmem:[%s621 + $0x70] sm:$0x3]
        %v642 = vld [vmem:[%s621 + $0x78] sm:$0xff]
        %v643 = vld [vmem:[%s621 + $0x80] sm:$0xff]
        %v644 = vld [vmem:[%s621 + $0x88] sm:$0x3]
        %v645 = vld [vmem:[%s621 + $0x90] sm:$0xff]
        %v646 = vld [vmem:[%s621 + $0x98] sm:$0xff]
        %v647 = vld [vmem:[%s621 + $0xa0] sm:$0x3]
        %v648 = vld [vmem:[%s621 + $0xa8] sm:$0xff]
        %v649 = vld [vmem:[%s621 + $0xb0] sm:$0xff]
        %v650 = vld [vmem:[%s621 + $0xb8] sm:$0x3]
        %v651 = vld [vmem:[%s621 + $0xc0] sm:$0xff]
        %v652 = vld [vmem:[%s621 + $0xc8] sm:$0xff]
        %v653 = vld [vmem:[%s621 + $0xd0] sm:$0x3]
        %v654 = vld [vmem:[%s621 + $0xd8] sm:$0xff]
        %v655 = vld [vmem:[%s621 + $0xe0] sm:$0xff]
        %v656 = vld [vmem:[%s621 + $0xe8] sm:$0x3]
        %v657 = vld [vmem:[%s621 + $0xf0] sm:$0xff]
        %v658 = vld [vmem:[%s621 + $0xf8] sm:$0xff]
        %v659 = vld [vmem:[%s621 + $0x100] sm:$0x3]
        %v660 = vld [vmem:[%s621 + $0x108] sm:$0xff]
        %v661 = vld [vmem:[%s621 + $0x110] sm:$0xff]
        %v662 = vld [vmem:[%s621 + $0x118] sm:$0x3]
        %v663 = vld [vmem:[%s621 + $0x120] sm:$0xff]
        %v664 = vld [vmem:[%s621 + $0x128] sm:$0xff]
        %v665 = vld [vmem:[%s621 + $0x130] sm:$0x3]
        %v666 = vld [vmem:[%s621 + $0x138] sm:$0xff]
        %v667 = vld [vmem:[%s621 + $0x140] sm:$0xff]
        %v668 = vld [vmem:[%s621 + $0x148] sm:$0x3]
        %v669 = vld [vmem:[%s621 + $0x150] sm:$0xff]
        %v670 = vld [vmem:[%s621 + $0x158] sm:$0xff]
        %v671 = vld [vmem:[%s621 + $0x160] sm:$0x3]
        %v672 = vld [vmem:[%s621 + $0x168] sm:$0xff]
        %v673 = vld [vmem:[%s621 + $0x170] sm:$0xff]
        %v674 = vld [vmem:[%s621 + $0x178] sm:$0x3]
        %v675 = vld [vmem:[%s621 + $0x180] sm:$0xff]
        %v676 = vld [vmem:[%s621 + $0x188] sm:$0xff]
        %v677 = vld [vmem:[%s621 + $0x190] sm:$0x3]
        %v678 = vld [vmem:[%s621 + $0x198] sm:$0xff]
        %v679 = vld [vmem:[%s621 + $0x1a0] sm:$0xff]
        %v680 = vld [vmem:[%s621 + $0x1a8] sm:$0x3]
        %v681 = vld [vmem:[%s1] sm:$0x7]
        %v682 = vld [vmem:[%s1 + $0x4] sm:$0x7]
        %v683 = vld [vmem:[%s1 + $0x8] sm:$0x7]
        %v684 = vlaneseq
        %v685 = vshrl.u32 %v684, 7
        %v686 = vsub.s32 0, %v685
        %v687 = vrot.slane %v681, %v686
        %v688 = vmul.f32 %v627, %v687
        %v689 = vmul.f32 %v628, %v687
        %v690 = vmul.f32 %v630, %v687
        %v691 = vmul.f32 %v631, %v687
        %v692 = vmul.f32 %v633, %v687
        %v693 = vmul.f32 %v634, %v687
        %v694 = vmul.f32 %v636, %v687
        %v695 = vmul.f32 %v637, %v687
        %v696 = vmul.f32 %v639, %v687
        %v697 = vmul.f32 %v640, %v687
        %v698 = vmul.f32 %v642, %v687
        %v699 = vmul.f32 %v643, %v687
        %v700 = vmul.f32 %v645, %v687
        %v701 = vmul.f32 %v646, %v687
        %v702 = vmul.f32 %v648, %v687
        %v703 = vmul.f32 %v649, %v687
        %v704 = vmul.f32 %v651, %v687
        %v705 = vmul.f32 %v652, %v687
        %v706 = vmul.f32 %v654, %v687
        %v707 = vmul.f32 %v655, %v687
        %v708 = vmul.f32 %v657, %v687
        %v709 = vmul.f32 %v658, %v687
        %v710 = vmul.f32 %v660, %v687
        %v711 = vmul.f32 %v661, %v687
        %v712 = vmul.f32 %v663, %v687
        %v713 = vmul.f32 %v664, %v687
        %v714 = vmul.f32 %v666, %v687
        %v715 = vmul.f32 %v667, %v687
        %v716 = vmul.f32 %v669, %v687
        %v717 = vmul.f32 %v670, %v687
        %v718 = vmul.f32 %v672, %v687
        %v719 = vmul.f32 %v673, %v687
        %v720 = vlaneseq
        %v721 = vshrl.u32 %v720, 7
        %v722 = vsub.s32 1, %v721
        %v723 = vrot.slane %v681, %v722
        %v724 = vmul.f32 %v627, %v723
        %v725 = vmul.f32 %v628, %v723
        %v726 = vmul.f32 %v629, %v723
        %v727 = vmul.f32 %v630, %v723
        %v728 = vmul.f32 %v631, %v723
        %v729 = vmul.f32 %v632, %v723
        %v730 = vmul.f32 %v633, %v723
        %v731 = vmul.f32 %v634, %v723
        %v732 = vmul.f32 %v635, %v723
        %v733 = vmul.f32 %v636, %v723
        %v734 = vmul.f32 %v637, %v723
        %v735 = vmul.f32 %v638, %v723
        %v736 = vmul.f32 %v639, %v723
        %v737 = vmul.f32 %v640, %v723
        %v738 = vmul.f32 %v641, %v723
        %v739 = vmul.f32 %v642, %v723
        %v740 = vmul.f32 %v643, %v723
        %v741 = vmul.f32 %v644, %v723
        %v742 = vmul.f32 %v645, %v723
        %v743 = vmul.f32 %v646, %v723
        %v744 = vmul.f32 %v647, %v723
        %v745 = vmul.f32 %v648, %v723
        %v746 = vmul.f32 %v649, %v723
        %v747 = vmul.f32 %v650, %v723
        %v748 = vmul.f32 %v651, %v723
        %v749 = vmul.f32 %v652, %v723
        %v750 = vmul.f32 %v653, %v723
        %v751 = vmul.f32 %v654, %v723
        %v752 = vmul.f32 %v655, %v723
        %v753 = vmul.f32 %v656, %v723
        %v754 = vmul.f32 %v657, %v723
        %v755 = vmul.f32 %v658, %v723
        %v756 = vmul.f32 %v659, %v723
        %v757 = vmul.f32 %v660, %v723
        %v758 = vmul.f32 %v661, %v723
        %v759 = vmul.f32 %v662, %v723
        %v760 = vmul.f32 %v663, %v723
        %v761 = vmul.f32 %v664, %v723
        %v762 = vmul.f32 %v665, %v723
        %v763 = vmul.f32 %v666, %v723
        %v764 = vmul.f32 %v667, %v723
        %v765 = vmul.f32 %v668, %v723
        %v766 = vmul.f32 %v669, %v723
        %v767 = vmul.f32 %v670, %v723
        %v768 = vmul.f32 %v671, %v723
        %v769 = vmul.f32 %v672, %v723
        %v770 = vmul.f32 %v673, %v723
        %v771 = vmul.f32 %v674, %v723
        %vm820 = vcmask 1046528
        %v821 = vrot.slane %v724, 1
        %v822 = vrot.slane %v725, 1
        %v823 = vsel %vm820, %v821, %v822
        %v824 = vrot.slane %v726, 1
        %v825 = vsel %vm820, %v822, %v824
        %v826 = vrot.slane %v727, 1
        %v827 = vrot.slane %v728, 1
        %v828 = vsel %vm820, %v826, %v827
        %v829 = vrot.slane %v729, 1
        %v830 = vsel %vm820, %v827, %v829
        %v831 = vrot.slane %v730, 1
        %v832 = vrot.slane %v731, 1
        %v833 = vsel %vm820, %v831, %v832
        %v834 = vrot.slane %v732, 1
        %v835 = vsel %vm820, %v832, %v834
        %v836 = vrot.slane %v733, 1
        %v837 = vrot.slane %v734, 1
        %v838 = vsel %vm820, %v836, %v837
        %v839 = vrot.slane %v735, 1
        %v840 = vsel %vm820, %v837, %v839
        %v841 = vrot.slane %v736, 1
        %v842 = vrot.slane %v737, 1
        %v843 = vsel %vm820, %v841, %v842
        %v844 = vrot.slane %v738, 1
        %v845 = vsel %vm820, %v842, %v844
        %v846 = vrot.slane %v739, 1
        %v847 = vrot.slane %v740, 1
        %v848 = vsel %vm820, %v846, %v847
        %v849 = vrot.slane %v741, 1
        %v850 = vsel %vm820, %v847, %v849
        %v851 = vrot.slane %v742, 1
        %v852 = vrot.slane %v743, 1
        %v853 = vsel %vm820, %v851, %v852
        %v854 = vrot.slane %v744, 1
        %v855 = vsel %vm820, %v852, %v854
        %v856 = vrot.slane %v745, 1
        %v857 = vrot.slane %v746, 1
        %v858 = vsel %vm820, %v856, %v857
        %v859 = vrot.slane %v747, 1
        %v860 = vsel %vm820, %v857, %v859
        %v861 = vrot.slane %v748, 1
        %v862 = vrot.slane %v749, 1
        %v863 = vsel %vm820, %v861, %v862
        %v864 = vrot.slane %v750, 1
        %v865 = vsel %vm820, %v862, %v864
        %v866 = vrot.slane %v751, 1
        %v867 = vrot.slane %v752, 1
        %v868 = vsel %vm820, %v866, %v867
        %v869 = vrot.slane %v753, 1
        %v870 = vsel %vm820, %v867, %v869
        %v871 = vrot.slane %v754, 1
        %v872 = vrot.slane %v755, 1
        %v873 = vsel %vm820, %v871, %v872
        %v874 = vrot.slane %v756, 1
        %v875 = vsel %vm820, %v872, %v874
        %v876 = vrot.slane %v757, 1
        %v877 = vrot.slane %v758, 1
        %v878 = vsel %vm820, %v876, %v877
        %v879 = vrot.slane %v759, 1
        %v880 = vsel %vm820, %v877, %v879
        %v881 = vrot.slane %v760, 1
        %v882 = vrot.slane %v761, 1
        %v883 = vsel %vm820, %v881, %v882
        %v884 = vrot.slane %v762, 1
        %v885 = vsel %vm820, %v882, %v884
        %v886 = vrot.slane %v763, 1
        %v887 = vrot.slane %v764, 1
        %v888 = vsel %vm820, %v886, %v887
        %v889 = vrot.slane %v765, 1
        %v890 = vsel %vm820, %v887, %v889
        %v891 = vrot.slane %v766, 1
        %v892 = vrot.slane %v767, 1
        %v893 = vsel %vm820, %v891, %v892
        %v894 = vrot.slane %v768, 1
        %v895 = vsel %vm820, %v892, %v894
        %v896 = vrot.slane %v769, 1
        %v897 = vrot.slane %v770, 1
        %v898 = vsel %vm820, %v896, %v897
        %v899 = vrot.slane %v771, 1
        %v900 = vsel %vm820, %v897, %v899
        %v933 = vadd.f32 %v688, %v823
        %v934 = vadd.f32 %v689, %v825
        %v935 = vadd.f32 %v690, %v828
        %v936 = vadd.f32 %v691, %v830
        %v937 = vadd.f32 %v692, %v833
        %v938 = vadd.f32 %v693, %v835
        %v939 = vadd.f32 %v694, %v838
        %v940 = vadd.f32 %v695, %v840
        %v941 = vadd.f32 %v696, %v843
        %v942 = vadd.f32 %v697, %v845
        %v943 = vadd.f32 %v698, %v848
        %v944 = vadd.f32 %v699, %v850
        %v945 = vadd.f32 %v700, %v853
        %v946 = vadd.f32 %v701, %v855
        %v947 = vadd.f32 %v702, %v858
        %v948 = vadd.f32 %v703, %v860
        %v949 = vadd.f32 %v704, %v863
        %v950 = vadd.f32 %v705, %v865
        %v951 = vadd.f32 %v706, %v868
        %v952 = vadd.f32 %v707, %v870
        %v953 = vadd.f32 %v708, %v873
        %v954 = vadd.f32 %v709, %v875
        %v955 = vadd.f32 %v710, %v878
        %v956 = vadd.f32 %v711, %v880
        %v957 = vadd.f32 %v712, %v883
        %v958 = vadd.f32 %v713, %v885
        %v959 = vadd.f32 %v714, %v888
        %v960 = vadd.f32 %v715, %v890
        %v961 = vadd.f32 %v716, %v893
        %v962 = vadd.f32 %v717, %v895
        %v963 = vadd.f32 %v718, %v898
        %v964 = vadd.f32 %v719, %v900
        %v965 = vlaneseq
        %v966 = vshrl.u32 %v965, 7
        %v967 = vsub.s32 2, %v966
        %v968 = vrot.slane %v681, %v967
        %v969 = vmul.f32 %v627, %v968
        %v970 = vmul.f32 %v628, %v968
        %v971 = vmul.f32 %v629, %v968
        %v972 = vmul.f32 %v630, %v968
        %v973 = vmul.f32 %v631, %v968
        %v974 = vmul.f32 %v632, %v968
        %v975 = vmul.f32 %v633, %v968
        %v976 = vmul.f32 %v634, %v968
        %v977 = vmul.f32 %v635, %v968
        %v978 = vmul.f32 %v636, %v968
        %v979 = vmul.f32 %v637, %v968
        %v980 = vmul.f32 %v638, %v968
        %v981 = vmul.f32 %v639, %v968
        %v982 = vmul.f32 %v640, %v968
        %v983 = vmul.f32 %v641, %v968
        %v984 = vmul.f32 %v642, %v968
        %v985 = vmul.f32 %v643, %v968
        %v986 = vmul.f32 %v644, %v968
        %v987 = vmul.f32 %v645, %v968
        %v988 = vmul.f32 %v646, %v968
        %v989 = vmul.f32 %v647, %v968
        %v990 = vmul.f32 %v648, %v968
        %v991 = vmul.f32 %v649, %v968
        %v992 = vmul.f32 %v650, %v968
        %v993 = vmul.f32 %v651, %v968
        %v994 = vmul.f32 %v652, %v968
        %v995 = vmul.f32 %v653, %v968
        %v996 = vmul.f32 %v654, %v968
        %v997 = vmul.f32 %v655, %v968
        %v998 = vmul.f32 %v656, %v968
        %v999 = vmul.f32 %v657, %v968
        %v1000 = vmul.f32 %v658, %v968
        %v1001 = vmul.f32 %v659, %v968
        %v1002 = vmul.f32 %v660, %v968
        %v1003 = vmul.f32 %v661, %v968
        %v1004 = vmul.f32 %v662, %v968
        %v1005 = vmul.f32 %v663, %v968
        %v1006 = vmul.f32 %v664, %v968
        %v1007 = vmul.f32 %v665, %v968
        %v1008 = vmul.f32 %v666, %v968
        %v1009 = vmul.f32 %v667, %v968
        %v1010 = vmul.f32 %v668, %v968
        %v1011 = vmul.f32 %v669, %v968
        %v1012 = vmul.f32 %v670, %v968
        %v1013 = vmul.f32 %v671, %v968
        %v1014 = vmul.f32 %v672, %v968
        %v1015 = vmul.f32 %v673, %v968
        %v1016 = vmul.f32 %v674, %v968
        %vm1065 = vcmask 1045504
        %v1066 = vrot.slane %v969, 2
        %v1067 = vrot.slane %v970, 2
        %v1068 = vsel %vm1065, %v1066, %v1067
        %v1069 = vrot.slane %v971, 2
        %v1070 = vsel %vm1065, %v1067, %v1069
        %v1071 = vrot.slane %v972, 2
        %v1072 = vrot.slane %v973, 2
        %v1073 = vsel %vm1065, %v1071, %v1072
        %v1074 = vrot.slane %v974, 2
        %v1075 = vsel %vm1065, %v1072, %v1074
        %v1076 = vrot.slane %v975, 2
        %v1077 = vrot.slane %v976, 2
        %v1078 = vsel %vm1065, %v1076, %v1077
        %v1079 = vrot.slane %v977, 2
        %v1080 = vsel %vm1065, %v1077, %v1079
        %v1081 = vrot.slane %v978, 2
        %v1082 = vrot.slane %v979, 2
        %v1083 = vsel %vm1065, %v1081, %v1082
        %v1084 = vrot.slane %v980, 2
        %v1085 = vsel %vm1065, %v1082, %v1084
        %v1086 = vrot.slane %v981, 2
        %v1087 = vrot.slane %v982, 2
        %v1088 = vsel %vm1065, %v1086, %v1087
        %v1089 = vrot.slane %v983, 2
        %v1090 = vsel %vm1065, %v1087, %v1089
        %v1091 = vrot.slane %v984, 2
        %v1092 = vrot.slane %v985, 2
        %v1093 = vsel %vm1065, %v1091, %v1092
        %v1094 = vrot.slane %v986, 2
        %v1095 = vsel %vm1065, %v1092, %v1094
        %v1096 = vrot.slane %v987, 2
        %v1097 = vrot.slane %v988, 2
        %v1098 = vsel %vm1065, %v1096, %v1097
        %v1099 = vrot.slane %v989, 2
        %v1100 = vsel %vm1065, %v1097, %v1099
        %v1101 = vrot.slane %v990, 2
        %v1102 = vrot.slane %v991, 2
        %v1103 = vsel %vm1065, %v1101, %v1102
        %v1104 = vrot.slane %v992, 2
        %v1105 = vsel %vm1065, %v1102, %v1104
        %v1106 = vrot.slane %v993, 2
        %v1107 = vrot.slane %v994, 2
        %v1108 = vsel %vm1065, %v1106, %v1107
        %v1109 = vrot.slane %v995, 2
        %v1110 = vsel %vm1065, %v1107, %v1109
        %v1111 = vrot.slane %v996, 2
        %v1112 = vrot.slane %v997, 2
        %v1113 = vsel %vm1065, %v1111, %v1112
        %v1114 = vrot.slane %v998, 2
        %v1115 = vsel %vm1065, %v1112, %v1114
        %v1116 = vrot.slane %v999, 2
        %v1117 = vrot.slane %v1000, 2
        %v1118 = vsel %vm1065, %v1116, %v1117
        %v1119 = vrot.slane %v1001, 2
        %v1120 = vsel %vm1065, %v1117, %v1119
        %v1121 = vrot.slane %v1002, 2
        %v1122 = vrot.slane %v1003, 2
        %v1123 = vsel %vm1065, %v1121, %v1122
        %v1124 = vrot.slane %v1004, 2
        %v1125 = vsel %vm1065, %v1122, %v1124
        %v1126 = vrot.slane %v1005, 2
        %v1127 = vrot.slane %v1006, 2
        %v1128 = vsel %vm1065, %v1126, %v1127
        %v1129 = vrot.slane %v1007, 2
        %v1130 = vsel %vm1065, %v1127, %v1129
        %v1131 = vrot.slane %v1008, 2
        %v1132 = vrot.slane %v1009, 2
        %v1133 = vsel %vm1065, %v1131, %v1132
        %v1134 = vrot.slane %v1010, 2
        %v1135 = vsel %vm1065, %v1132, %v1134
        %v1136 = vrot.slane %v1011, 2
        %v1137 = vrot.slane %v1012, 2
        %v1138 = vsel %vm1065, %v1136, %v1137
        %v1139 = vrot.slane %v1013, 2
        %v1140 = vsel %vm1065, %v1137, %v1139
        %v1141 = vrot.slane %v1014, 2
        %v1142 = vrot.slane %v1015, 2
        %v1143 = vsel %vm1065, %v1141, %v1142
        %v1144 = vrot.slane %v1016, 2
        %v1145 = vsel %vm1065, %v1142, %v1144
        %v1178 = vadd.f32 %v933, %v1068
        %v1179 = vadd.f32 %v934, %v1070
        %v1180 = vadd.f32 %v935, %v1073
        %v1181 = vadd.f32 %v936, %v1075
        %v1182 = vadd.f32 %v937, %v1078
        %v1183 = vadd.f32 %v938, %v1080
        %v1184 = vadd.f32 %v939, %v1083
        %v1185 = vadd.f32 %v940, %v1085
        %v1186 = vadd.f32 %v941, %v1088
        %v1187 = vadd.f32 %v942, %v1090
        %v1188 = vadd.f32 %v943, %v1093
        %v1189 = vadd.f32 %v944, %v1095
        %v1190 = vadd.f32 %v945, %v1098
        %v1191 = vadd.f32 %v946, %v1100
        %v1192 = vadd.f32 %v947, %v1103
        %v1193 = vadd.f32 %v948, %v1105
        %v1194 = vadd.f32 %v949, %v1108
        %v1195 = vadd.f32 %v950, %v1110
        %v1196 = vadd.f32 %v951, %v1113
        %v1197 = vadd.f32 %v952, %v1115
        %v1198 = vadd.f32 %v953, %v1118
        %v1199 = vadd.f32 %v954, %v1120
        %v1200 = vadd.f32 %v955, %v1123
        %v1201 = vadd.f32 %v956, %v1125
        %v1202 = vadd.f32 %v957, %v1128
        %v1203 = vadd.f32 %v958, %v1130
        %v1204 = vadd.f32 %v959, %v1133
        %v1205 = vadd.f32 %v960, %v1135
        %v1206 = vadd.f32 %v961, %v1138
        %v1207 = vadd.f32 %v962, %v1140
        %v1208 = vadd.f32 %v963, %v1143
        %v1209 = vadd.f32 %v964, %v1145
        %v1210 = vlaneseq
        %v1211 = vshrl.u32 %v1210, 7
        %v1212 = vsub.s32 0, %v1211
        %v1213 = vrot.slane %v682, %v1212
        %v1214 = vmul.f32 %v630, %v1213
        %v1215 = vmul.f32 %v631, %v1213
        %v1216 = vmul.f32 %v633, %v1213
        %v1217 = vmul.f32 %v634, %v1213
        %v1218 = vmul.f32 %v636, %v1213
        %v1219 = vmul.f32 %v637, %v1213
        %v1220 = vmul.f32 %v639, %v1213
        %v1221 = vmul.f32 %v640, %v1213
        %v1222 = vmul.f32 %v642, %v1213
        %v1223 = vmul.f32 %v643, %v1213
        %v1224 = vmul.f32 %v645, %v1213
        %v1225 = vmul.f32 %v646, %v1213
        %v1226 = vmul.f32 %v648, %v1213
        %v1227 = vmul.f32 %v649, %v1213
        %v1228 = vmul.f32 %v651, %v1213
        %v1229 = vmul.f32 %v652, %v1213
        %v1230 = vmul.f32 %v654, %v1213
        %v1231 = vmul.f32 %v655, %v1213
        %v1232 = vmul.f32 %v657, %v1213
        %v1233 = vmul.f32 %v658, %v1213
        %v1234 = vmul.f32 %v660, %v1213
        %v1235 = vmul.f32 %v661, %v1213
        %v1236 = vmul.f32 %v663, %v1213
        %v1237 = vmul.f32 %v664, %v1213
        %v1238 = vmul.f32 %v666, %v1213
        %v1239 = vmul.f32 %v667, %v1213
        %v1240 = vmul.f32 %v669, %v1213
        %v1241 = vmul.f32 %v670, %v1213
        %v1242 = vmul.f32 %v672, %v1213
        %v1243 = vmul.f32 %v673, %v1213
        %v1244 = vmul.f32 %v675, %v1213
        %v1245 = vmul.f32 %v676, %v1213
        %v1246 = vadd.f32 %v1178, %v1214
        %v1247 = vadd.f32 %v1179, %v1215
        %v1248 = vadd.f32 %v1180, %v1216
        %v1249 = vadd.f32 %v1181, %v1217
        %v1250 = vadd.f32 %v1182, %v1218
        %v1251 = vadd.f32 %v1183, %v1219
        %v1252 = vadd.f32 %v1184, %v1220
        %v1253 = vadd.f32 %v1185, %v1221
        %v1254 = vadd.f32 %v1186, %v1222
        %v1255 = vadd.f32 %v1187, %v1223
        %v1256 = vadd.f32 %v1188, %v1224
        %v1257 = vadd.f32 %v1189, %v1225
        %v1258 = vadd.f32 %v1190, %v1226
        %v1259 = vadd.f32 %v1191, %v1227
        %v1260 = vadd.f32 %v1192, %v1228
        %v1261 = vadd.f32 %v1193, %v1229
        %v1262 = vadd.f32 %v1194, %v1230
        %v1263 = vadd.f32 %v1195, %v1231
        %v1264 = vadd.f32 %v1196, %v1232
        %v1265 = vadd.f32 %v1197, %v1233
        %v1266 = vadd.f32 %v1198, %v1234
        %v1267 = vadd.f32 %v1199, %v1235
        %v1268 = vadd.f32 %v1200, %v1236
        %v1269 = vadd.f32 %v1201, %v1237
        %v1270 = vadd.f32 %v1202, %v1238
        %v1271 = vadd.f32 %v1203, %v1239
        %v1272 = vadd.f32 %v1204, %v1240
        %v1273 = vadd.f32 %v1205, %v1241
        %v1274 = vadd.f32 %v1206, %v1242
        %v1275 = vadd.f32 %v1207, %v1243
        %v1276 = vadd.f32 %v1208, %v1244
        %v1277 = vadd.f32 %v1209, %v1245
        %v1278 = vlaneseq
        %v1279 = vshrl.u32 %v1278, 7
        %v1280 = vsub.s32 1, %v1279
        %v1281 = vrot.slane %v682, %v1280
        %v1282 = vmul.f32 %v630, %v1281
        %v1283 = vmul.f32 %v631, %v1281
        %v1284 = vmul.f32 %v632, %v1281
        %v1285 = vmul.f32 %v633, %v1281
        %v1286 = vmul.f32 %v634, %v1281
        %v1287 = vmul.f32 %v635, %v1281
        %v1288 = vmul.f32 %v636, %v1281
        %v1289 = vmul.f32 %v637, %v1281
        %v1290 = vmul.f32 %v638, %v1281
        %v1291 = vmul.f32 %v639, %v1281
        %v1292 = vmul.f32 %v640, %v1281
        %v1293 = vmul.f32 %v641, %v1281
        %v1294 = vmul.f32 %v642, %v1281
        %v1295 = vmul.f32 %v643, %v1281
        %v1296 = vmul.f32 %v644, %v1281
        %v1297 = vmul.f32 %v645, %v1281
        %v1298 = vmul.f32 %v646, %v1281
        %v1299 = vmul.f32 %v647, %v1281
        %v1300 = vmul.f32 %v648, %v1281
        %v1301 = vmul.f32 %v649, %v1281
        %v1302 = vmul.f32 %v650, %v1281
        %v1303 = vmul.f32 %v651, %v1281
        %v1304 = vmul.f32 %v652, %v1281
        %v1305 = vmul.f32 %v653, %v1281
        %v1306 = vmul.f32 %v654, %v1281
        %v1307 = vmul.f32 %v655, %v1281
        %v1308 = vmul.f32 %v656, %v1281
        %v1309 = vmul.f32 %v657, %v1281
        %v1310 = vmul.f32 %v658, %v1281
        %v1311 = vmul.f32 %v659, %v1281
        %v1312 = vmul.f32 %v660, %v1281
        %v1313 = vmul.f32 %v661, %v1281
        %v1314 = vmul.f32 %v662, %v1281
        %v1315 = vmul.f32 %v663, %v1281
        %v1316 = vmul.f32 %v664, %v1281
        %v1317 = vmul.f32 %v665, %v1281
        %v1318 = vmul.f32 %v666, %v1281
        %v1319 = vmul.f32 %v667, %v1281
        %v1320 = vmul.f32 %v668, %v1281
        %v1321 = vmul.f32 %v669, %v1281
        %v1322 = vmul.f32 %v670, %v1281
        %v1323 = vmul.f32 %v671, %v1281
        %v1324 = vmul.f32 %v672, %v1281
        %v1325 = vmul.f32 %v673, %v1281
        %v1326 = vmul.f32 %v674, %v1281
        %v1327 = vmul.f32 %v675, %v1281
        %v1328 = vmul.f32 %v676, %v1281
        %v1329 = vmul.f32 %v677, %v1281
        %v1378 = vrot.slane %v1282, 1
        %v1379 = vrot.slane %v1283, 1
        %v1380 = vsel %vm820, %v1378, %v1379
        %v1381 = vrot.slane %v1284, 1
        %v1382 = vsel %vm820, %v1379, %v1381
        %v1383 = vrot.slane %v1285, 1
        %v1384 = vrot.slane %v1286, 1
        %v1385 = vsel %vm820, %v1383, %v1384
        %v1386 = vrot.slane %v1287, 1
        %v1387 = vsel %vm820, %v1384, %v1386
        %v1388 = vrot.slane %v1288, 1
        %v1389 = vrot.slane %v1289, 1
        %v1390 = vsel %vm820, %v1388, %v1389
        %v1391 = vrot.slane %v1290, 1
        %v1392 = vsel %vm820, %v1389, %v1391
        %v1393 = vrot.slane %v1291, 1
        %v1394 = vrot.slane %v1292, 1
        %v1395 = vsel %vm820, %v1393, %v1394
        %v1396 = vrot.slane %v1293, 1
        %v1397 = vsel %vm820, %v1394, %v1396
        %v1398 = vrot.slane %v1294, 1
        %v1399 = vrot.slane %v1295, 1
        %v1400 = vsel %vm820, %v1398, %v1399
        %v1401 = vrot.slane %v1296, 1
        %v1402 = vsel %vm820, %v1399, %v1401
        %v1403 = vrot.slane %v1297, 1
        %v1404 = vrot.slane %v1298, 1
        %v1405 = vsel %vm820, %v1403, %v1404
        %v1406 = vrot.slane %v1299, 1
        %v1407 = vsel %vm820, %v1404, %v1406
        %v1408 = vrot.slane %v1300, 1
        %v1409 = vrot.slane %v1301, 1
        %v1410 = vsel %vm820, %v1408, %v1409
        %v1411 = vrot.slane %v1302, 1
        %v1412 = vsel %vm820, %v1409, %v1411
        %v1413 = vrot.slane %v1303, 1
        %v1414 = vrot.slane %v1304, 1
        %v1415 = vsel %vm820, %v1413, %v1414
        %v1416 = vrot.slane %v1305, 1
        %v1417 = vsel %vm820, %v1414, %v1416
        %v1418 = vrot.slane %v1306, 1
        %v1419 = vrot.slane %v1307, 1
        %v1420 = vsel %vm820, %v1418, %v1419
        %v1421 = vrot.slane %v1308, 1
        %v1422 = vsel %vm820, %v1419, %v1421
        %v1423 = vrot.slane %v1309, 1
        %v1424 = vrot.slane %v1310, 1
        %v1425 = vsel %vm820, %v1423, %v1424
        %v1426 = vrot.slane %v1311, 1
        %v1427 = vsel %vm820, %v1424, %v1426
        %v1428 = vrot.slane %v1312, 1
        %v1429 = vrot.slane %v1313, 1
        %v1430 = vsel %vm820, %v1428, %v1429
        %v1431 = vrot.slane %v1314, 1
        %v1432 = vsel %vm820, %v1429, %v1431
        %v1433 = vrot.slane %v1315, 1
        %v1434 = vrot.slane %v1316, 1
        %v1435 = vsel %vm820, %v1433, %v1434
        %v1436 = vrot.slane %v1317, 1
        %v1437 = vsel %vm820, %v1434, %v1436
        %v1438 = vrot.slane %v1318, 1
        %v1439 = vrot.slane %v1319, 1
        %v1440 = vsel %vm820, %v1438, %v1439
        %v1441 = vrot.slane %v1320, 1
        %v1442 = vsel %vm820, %v1439, %v1441
        %v1443 = vrot.slane %v1321, 1
        %v1444 = vrot.slane %v1322, 1
        %v1445 = vsel %vm820, %v1443, %v1444
        %v1446 = vrot.slane %v1323, 1
        %v1447 = vsel %vm820, %v1444, %v1446
        %v1448 = vrot.slane %v1324, 1
        %v1449 = vrot.slane %v1325, 1
        %v1450 = vsel %vm820, %v1448, %v1449
        %v1451 = vrot.slane %v1326, 1
        %v1452 = vsel %vm820, %v1449, %v1451
        %v1453 = vrot.slane %v1327, 1
        %v1454 = vrot.slane %v1328, 1
        %v1455 = vsel %vm820, %v1453, %v1454
        %v1456 = vrot.slane %v1329, 1
        %v1457 = vsel %vm820, %v1454, %v1456
        %v1490 = vadd.f32 %v1246, %v1380
        %v1491 = vadd.f32 %v1247, %v1382
        %v1492 = vadd.f32 %v1248, %v1385
        %v1493 = vadd.f32 %v1249, %v1387
        %v1494 = vadd.f32 %v1250, %v1390
        %v1495 = vadd.f32 %v1251, %v1392
        %v1496 = vadd.f32 %v1252, %v1395
        %v1497 = vadd.f32 %v1253, %v1397
        %v1498 = vadd.f32 %v1254, %v1400
        %v1499 = vadd.f32 %v1255, %v1402
        %v1500 = vadd.f32 %v1256, %v1405
        %v1501 = vadd.f32 %v1257, %v1407
        %v1502 = vadd.f32 %v1258, %v1410
        %v1503 = vadd.f32 %v1259, %v1412
        %v1504 = vadd.f32 %v1260, %v1415
        %v1505 = vadd.f32 %v1261, %v1417
        %v1506 = vadd.f32 %v1262, %v1420
        %v1507 = vadd.f32 %v1263, %v1422
        %v1508 = vadd.f32 %v1264, %v1425
        %v1509 = vadd.f32 %v1265, %v1427
        %v1510 = vadd.f32 %v1266, %v1430
        %v1511 = vadd.f32 %v1267, %v1432
        %v1512 = vadd.f32 %v1268, %v1435
        %v1513 = vadd.f32 %v1269, %v1437
        %v1514 = vadd.f32 %v1270, %v1440
        %v1515 = vadd.f32 %v1271, %v1442
        %v1516 = vadd.f32 %v1272, %v1445
        %v1517 = vadd.f32 %v1273, %v1447
        %v1518 = vadd.f32 %v1274, %v1450
        %v1519 = vadd.f32 %v1275, %v1452
        %v1520 = vadd.f32 %v1276, %v1455
        %v1521 = vadd.f32 %v1277, %v1457
        %v1522 = vlaneseq
        %v1523 = vshrl.u32 %v1522, 7
        %v1524 = vsub.s32 2, %v1523
        %v1525 = vrot.slane %v682, %v1524
        %v1526 = vmul.f32 %v630, %v1525
        %v1527 = vmul.f32 %v631, %v1525
        %v1528 = vmul.f32 %v632, %v1525
        %v1529 = vmul.f32 %v633, %v1525
        %v1530 = vmul.f32 %v634, %v1525
        %v1531 = vmul.f32 %v635, %v1525
        %v1532 = vmul.f32 %v636, %v1525
        %v1533 = vmul.f32 %v637, %v1525
        %v1534 = vmul.f32 %v638, %v1525
        %v1535 = vmul.f32 %v639, %v1525
        %v1536 = vmul.f32 %v640, %v1525
        %v1537 = vmul.f32 %v641, %v1525
        %v1538 = vmul.f32 %v642, %v1525
        %v1539 = vmul.f32 %v643, %v1525
        %v1540 = vmul.f32 %v644, %v1525
        %v1541 = vmul.f32 %v645, %v1525
        %v1542 = vmul.f32 %v646, %v1525
        %v1543 = vmul.f32 %v647, %v1525
        %v1544 = vmul.f32 %v648, %v1525
        %v1545 = vmul.f32 %v649, %v1525
        %v1546 = vmul.f32 %v650, %v1525
        %v1547 = vmul.f32 %v651, %v1525
        %v1548 = vmul.f32 %v652, %v1525
        %v1549 = vmul.f32 %v653, %v1525
        %v1550 = vmul.f32 %v654, %v1525
        %v1551 = vmul.f32 %v655, %v1525
        %v1552 = vmul.f32 %v656, %v1525
        %v1553 = vmul.f32 %v657, %v1525
        %v1554 = vmul.f32 %v658, %v1525
        %v1555 = vmul.f32 %v659, %v1525
        %v1556 = vmul.f32 %v660, %v1525
        %v1557 = vmul.f32 %v661, %v1525
        %v1558 = vmul.f32 %v662, %v1525
        %v1559 = vmul.f32 %v663, %v1525
        %v1560 = vmul.f32 %v664, %v1525
        %v1561 = vmul.f32 %v665, %v1525
        %v1562 = vmul.f32 %v666, %v1525
        %v1563 = vmul.f32 %v667, %v1525
        %v1564 = vmul.f32 %v668, %v1525
        %v1565 = vmul.f32 %v669, %v1525
        %v1566 = vmul.f32 %v670, %v1525
        %v1567 = vmul.f32 %v671, %v1525
        %v1568 = vmul.f32 %v672, %v1525
        %v1569 = vmul.f32 %v673, %v1525
        %v1570 = vmul.f32 %v674, %v1525
        %v1571 = vmul.f32 %v675, %v1525
        %v1572 = vmul.f32 %v676, %v1525
        %v1573 = vmul.f32 %v677, %v1525
        %v1622 = vrot.slane %v1526, 2
        %v1623 = vrot.slane %v1527, 2
        %v1624 = vsel %vm1065, %v1622, %v1623
        %v1625 = vrot.slane %v1528, 2
        %v1626 = vsel %vm1065, %v1623, %v1625
        %v1627 = vrot.slane %v1529, 2
        %v1628 = vrot.slane %v1530, 2
        %v1629 = vsel %vm1065, %v1627, %v1628
        %v1630 = vrot.slane %v1531, 2
        %v1631 = vsel %vm1065, %v1628, %v1630
        %v1632 = vrot.slane %v1532, 2
        %v1633 = vrot.slane %v1533, 2
        %v1634 = vsel %vm1065, %v1632, %v1633
        %v1635 = vrot.slane %v1534, 2
        %v1636 = vsel %vm1065, %v1633, %v1635
        %v1637 = vrot.slane %v1535, 2
        %v1638 = vrot.slane %v1536, 2
        %v1639 = vsel %vm1065, %v1637, %v1638
        %v1640 = vrot.slane %v1537, 2
        %v1641 = vsel %vm1065, %v1638, %v1640
        %v1642 = vrot.slane %v1538, 2
        %v1643 = vrot.slane %v1539, 2
        %v1644 = vsel %vm1065, %v1642, %v1643
        %v1645 = vrot.slane %v1540, 2
        %v1646 = vsel %vm1065, %v1643, %v1645
        %v1647 = vrot.slane %v1541, 2
        %v1648 = vrot.slane %v1542, 2
        %v1649 = vsel %vm1065, %v1647, %v1648
        %v1650 = vrot.slane %v1543, 2
        %v1651 = vsel %vm1065, %v1648, %v1650
        %v1652 = vrot.slane %v1544, 2
        %v1653 = vrot.slane %v1545, 2
        %v1654 = vsel %vm1065, %v1652, %v1653
        %v1655 = vrot.slane %v1546, 2
        %v1656 = vsel %vm1065, %v1653, %v1655
        %v1657 = vrot.slane %v1547, 2
        %v1658 = vrot.slane %v1548, 2
        %v1659 = vsel %vm1065, %v1657, %v1658
        %v1660 = vrot.slane %v1549, 2
        %v1661 = vsel %vm1065, %v1658, %v1660
        %v1662 = vrot.slane %v1550, 2
        %v1663 = vrot.slane %v1551, 2
        %v1664 = vsel %vm1065, %v1662, %v1663
        %v1665 = vrot.slane %v1552, 2
        %v1666 = vsel %vm1065, %v1663, %v1665
        %v1667 = vrot.slane %v1553, 2
        %v1668 = vrot.slane %v1554, 2
        %v1669 = vsel %vm1065, %v1667, %v1668
        %v1670 = vrot.slane %v1555, 2
        %v1671 = vsel %vm1065, %v1668, %v1670
        %v1672 = vrot.slane %v1556, 2
        %v1673 = vrot.slane %v1557, 2
        %v1674 = vsel %vm1065, %v1672, %v1673
        %v1675 = vrot.slane %v1558, 2
        %v1676 = vsel %vm1065, %v1673, %v1675
        %v1677 = vrot.slane %v1559, 2
        %v1678 = vrot.slane %v1560, 2
        %v1679 = vsel %vm1065, %v1677, %v1678
        %v1680 = vrot.slane %v1561, 2
        %v1681 = vsel %vm1065, %v1678, %v1680
        %v1682 = vrot.slane %v1562, 2
        %v1683 = vrot.slane %v1563, 2
        %v1684 = vsel %vm1065, %v1682, %v1683
        %v1685 = vrot.slane %v1564, 2
        %v1686 = vsel %vm1065, %v1683, %v1685
        %v1687 = vrot.slane %v1565, 2
        %v1688 = vrot.slane %v1566, 2
        %v1689 = vsel %vm1065, %v1687, %v1688
        %v1690 = vrot.slane %v1567, 2
        %v1691 = vsel %vm1065, %v1688, %v1690
        %v1692 = vrot.slane %v1568, 2
        %v1693 = vrot.slane %v1569, 2
        %v1694 = vsel %vm1065, %v1692, %v1693
        %v1695 = vrot.slane %v1570, 2
        %v1696 = vsel %vm1065, %v1693, %v1695
        %v1697 = vrot.slane %v1571, 2
        %v1698 = vrot.slane %v1572, 2
        %v1699 = vsel %vm1065, %v1697, %v1698
        %v1700 = vrot.slane %v1573, 2
        %v1701 = vsel %vm1065, %v1698, %v1700
        %v1734 = vadd.f32 %v1490, %v1624
        %v1735 = vadd.f32 %v1491, %v1626
        %v1736 = vadd.f32 %v1492, %v1629
        %v1737 = vadd.f32 %v1493, %v1631
        %v1738 = vadd.f32 %v1494, %v1634
        %v1739 = vadd.f32 %v1495, %v1636
        %v1740 = vadd.f32 %v1496, %v1639
        %v1741 = vadd.f32 %v1497, %v1641
        %v1742 = vadd.f32 %v1498, %v1644
        %v1743 = vadd.f32 %v1499, %v1646
        %v1744 = vadd.f32 %v1500, %v1649
        %v1745 = vadd.f32 %v1501, %v1651
        %v1746 = vadd.f32 %v1502, %v1654
        %v1747 = vadd.f32 %v1503, %v1656
        %v1748 = vadd.f32 %v1504, %v1659
        %v1749 = vadd.f32 %v1505, %v1661
        %v1750 = vadd.f32 %v1506, %v1664
        %v1751 = vadd.f32 %v1507, %v1666
        %v1752 = vadd.f32 %v1508, %v1669
        %v1753 = vadd.f32 %v1509, %v1671
        %v1754 = vadd.f32 %v1510, %v1674
        %v1755 = vadd.f32 %v1511, %v1676
        %v1756 = vadd.f32 %v1512, %v1679
        %v1757 = vadd.f32 %v1513, %v1681
        %v1758 = vadd.f32 %v1514, %v1684
        %v1759 = vadd.f32 %v1515, %v1686
        %v1760 = vadd.f32 %v1516, %v1689
        %v1761 = vadd.f32 %v1517, %v1691
        %v1762 = vadd.f32 %v1518, %v1694
        %v1763 = vadd.f32 %v1519, %v1696
        %v1764 = vadd.f32 %v1520, %v1699
        %v1765 = vadd.f32 %v1521, %v1701
        %v1766 = vlaneseq
        %v1767 = vshrl.u32 %v1766, 7
        %v1768 = vsub.s32 0, %v1767
        %v1769 = vrot.slane %v683, %v1768
        %v1770 = vmul.f32 %v633, %v1769
        %v1771 = vmul.f32 %v634, %v1769
        %v1772 = vmul.f32 %v636, %v1769
        %v1773 = vmul.f32 %v637, %v1769
        %v1774 = vmul.f32 %v639, %v1769
        %v1775 = vmul.f32 %v640, %v1769
        %v1776 = vmul.f32 %v642, %v1769
        %v1777 = vmul.f32 %v643, %v1769
        %v1778 = vmul.f32 %v645, %v1769
        %v1779 = vmul.f32 %v646, %v1769
        %v1780 = vmul.f32 %v648, %v1769
        %v1781 = vmul.f32 %v649, %v1769
        %v1782 = vmul.f32 %v651, %v1769
        %v1783 = vmul.f32 %v652, %v1769
        %v1784 = vmul.f32 %v654, %v1769
        %v1785 = vmul.f32 %v655, %v1769
        %v1786 = vmul.f32 %v657, %v1769
        %v1787 = vmul.f32 %v658, %v1769
        %v1788 = vmul.f32 %v660, %v1769
        %v1789 = vmul.f32 %v661, %v1769
        %v1790 = vmul.f32 %v663, %v1769
        %v1791 = vmul.f32 %v664, %v1769
        %v1792 = vmul.f32 %v666, %v1769
        %v1793 = vmul.f32 %v667, %v1769
        %v1794 = vmul.f32 %v669, %v1769
        %v1795 = vmul.f32 %v670, %v1769
        %v1796 = vmul.f32 %v672, %v1769
        %v1797 = vmul.f32 %v673, %v1769
        %v1798 = vmul.f32 %v675, %v1769
        %v1799 = vmul.f32 %v676, %v1769
        %v1800 = vmul.f32 %v678, %v1769
        %v1801 = vmul.f32 %v679, %v1769
        %v1802 = vadd.f32 %v1734, %v1770
        %v1803 = vadd.f32 %v1735, %v1771
        %v1804 = vadd.f32 %v1736, %v1772
        %v1805 = vadd.f32 %v1737, %v1773
        %v1806 = vadd.f32 %v1738, %v1774
        %v1807 = vadd.f32 %v1739, %v1775
        %v1808 = vadd.f32 %v1740, %v1776
        %v1809 = vadd.f32 %v1741, %v1777
        %v1810 = vadd.f32 %v1742, %v1778
        %v1811 = vadd.f32 %v1743, %v1779
        %v1812 = vadd.f32 %v1744, %v1780
        %v1813 = vadd.f32 %v1745, %v1781
        %v1814 = vadd.f32 %v1746, %v1782
        %v1815 = vadd.f32 %v1747, %v1783
        %v1816 = vadd.f32 %v1748, %v1784
        %v1817 = vadd.f32 %v1749, %v1785
        %v1818 = vadd.f32 %v1750, %v1786
        %v1819 = vadd.f32 %v1751, %v1787
        %v1820 = vadd.f32 %v1752, %v1788
        %v1821 = vadd.f32 %v1753, %v1789
        %v1822 = vadd.f32 %v1754, %v1790
        %v1823 = vadd.f32 %v1755, %v1791
        %v1824 = vadd.f32 %v1756, %v1792
        %v1825 = vadd.f32 %v1757, %v1793
        %v1826 = vadd.f32 %v1758, %v1794
        %v1827 = vadd.f32 %v1759, %v1795
        %v1828 = vadd.f32 %v1760, %v1796
        %v1829 = vadd.f32 %v1761, %v1797
        %v1830 = vadd.f32 %v1762, %v1798
        %v1831 = vadd.f32 %v1763, %v1799
        %v1832 = vadd.f32 %v1764, %v1800
        %v1833 = vadd.f32 %v1765, %v1801
        %v1834 = vlaneseq
        %v1835 = vshrl.u32 %v1834, 7
        %v1836 = vsub.s32 1, %v1835
        %v1837 = vrot.slane %v683, %v1836
        %v1838 = vmul.f32 %v633, %v1837
        %v1839 = vmul.f32 %v634, %v1837
        %v1840 = vmul.f32 %v635, %v1837
        %v1841 = vmul.f32 %v636, %v1837
        %v1842 = vmul.f32 %v637, %v1837
        %v1843 = vmul.f32 %v638, %v1837
        %v1844 = vmul.f32 %v639, %v1837
        %v1845 = vmul.f32 %v640, %v1837
        %v1846 = vmul.f32 %v641, %v1837
        %v1847 = vmul.f32 %v642, %v1837
        %v1848 = vmul.f32 %v643, %v1837
        %v1849 = vmul.f32 %v644, %v1837
        %v1850 = vmul.f32 %v645, %v1837
        %v1851 = vmul.f32 %v646, %v1837
        %v1852 = vmul.f32 %v647, %v1837
        %v1853 = vmul.f32 %v648, %v1837
        %v1854 = vmul.f32 %v649, %v1837
        %v1855 = vmul.f32 %v650, %v1837
        %v1856 = vmul.f32 %v651, %v1837
        %v1857 = vmul.f32 %v652, %v1837
        %v1858 = vmul.f32 %v653, %v1837
        %v1859 = vmul.f32 %v654, %v1837
        %v1860 = vmul.f32 %v655, %v1837
        %v1861 = vmul.f32 %v656, %v1837
        %v1862 = vmul.f32 %v657, %v1837
        %v1863 = vmul.f32 %v658, %v1837
        %v1864 = vmul.f32 %v659, %v1837
        %v1865 = vmul.f32 %v660, %v1837
        %v1866 = vmul.f32 %v661, %v1837
        %v1867 = vmul.f32 %v662, %v1837
        %v1868 = vmul.f32 %v663, %v1837
        %v1869 = vmul.f32 %v664, %v1837
        %v1870 = vmul.f32 %v665, %v1837
        %v1871 = vmul.f32 %v666, %v1837
        %v1872 = vmul.f32 %v667, %v1837
        %v1873 = vmul.f32 %v668, %v1837
        %v1874 = vmul.f32 %v669, %v1837
        %v1875 = vmul.f32 %v670, %v1837
        %v1876 = vmul.f32 %v671, %v1837
        %v1877 = vmul.f32 %v672, %v1837
        %v1878 = vmul.f32 %v673, %v1837
        %v1879 = vmul.f32 %v674, %v1837
        %v1880 = vmul.f32 %v675, %v1837
        %v1881 = vmul.f32 %v676, %v1837
        %v1882 = vmul.f32 %v677, %v1837
        %v1883 = vmul.f32 %v678, %v1837
        %v1884 = vmul.f32 %v679, %v1837
        %v1885 = vmul.f32 %v680, %v1837
        %v1934 = vrot.slane %v1838, 1
        %v1935 = vrot.slane %v1839, 1
        %v1936 = vsel %vm820, %v1934, %v1935
        %v1937 = vrot.slane %v1840, 1
        %v1938 = vsel %vm820, %v1935, %v1937
        %v1939 = vrot.slane %v1841, 1
        %v1940 = vrot.slane %v1842, 1
        %v1941 = vsel %vm820, %v1939, %v1940
        %v1942 = vrot.slane %v1843, 1
        %v1943 = vsel %vm820, %v1940, %v1942
        %v1944 = vrot.slane %v1844, 1
        %v1945 = vrot.slane %v1845, 1
        %v1946 = vsel %vm820, %v1944, %v1945
        %v1947 = vrot.slane %v1846, 1
        %v1948 = vsel %vm820, %v1945, %v1947
        %v1949 = vrot.slane %v1847, 1
        %v1950 = vrot.slane %v1848, 1
        %v1951 = vsel %vm820, %v1949, %v1950
        %v1952 = vrot.slane %v1849, 1
        %v1953 = vsel %vm820, %v1950, %v1952
        %v1954 = vrot.slane %v1850, 1
        %v1955 = vrot.slane %v1851, 1
        %v1956 = vsel %vm820, %v1954, %v1955
        %v1957 = vrot.slane %v1852, 1
        %v1958 = vsel %vm820, %v1955, %v1957
        %v1959 = vrot.slane %v1853, 1
        %v1960 = vrot.slane %v1854, 1
        %v1961 = vsel %vm820, %v1959, %v1960
        %v1962 = vrot.slane %v1855, 1
        %v1963 = vsel %vm820, %v1960, %v1962
        %v1964 = vrot.slane %v1856, 1
        %v1965 = vrot.slane %v1857, 1
        %v1966 = vsel %vm820, %v1964, %v1965
        %v1967 = vrot.slane %v1858, 1
        %v1968 = vsel %vm820, %v1965, %v1967
        %v1969 = vrot.slane %v1859, 1
        %v1970 = vrot.slane %v1860, 1
        %v1971 = vsel %vm820, %v1969, %v1970
        %v1972 = vrot.slane %v1861, 1
        %v1973 = vsel %vm820, %v1970, %v1972
        %v1974 = vrot.slane %v1862, 1
        %v1975 = vrot.slane %v1863, 1
        %v1976 = vsel %vm820, %v1974, %v1975
        %v1977 = vrot.slane %v1864, 1
        %v1978 = vsel %vm820, %v1975, %v1977
        %v1979 = vrot.slane %v1865, 1
        %v1980 = vrot.slane %v1866, 1
        %v1981 = vsel %vm820, %v1979, %v1980
        %v1982 = vrot.slane %v1867, 1
        %v1983 = vsel %vm820, %v1980, %v1982
        %v1984 = vrot.slane %v1868, 1
        %v1985 = vrot.slane %v1869, 1
        %v1986 = vsel %vm820, %v1984, %v1985
        %v1987 = vrot.slane %v1870, 1
        %v1988 = vsel %vm820, %v1985, %v1987
        %v1989 = vrot.slane %v1871, 1
        %v1990 = vrot.slane %v1872, 1
        %v1991 = vsel %vm820, %v1989, %v1990
        %v1992 = vrot.slane %v1873, 1
        %v1993 = vsel %vm820, %v1990, %v1992
        %v1994 = vrot.slane %v1874, 1
        %v1995 = vrot.slane %v1875, 1
        %v1996 = vsel %vm820, %v1994, %v1995
        %v1997 = vrot.slane %v1876, 1
        %v1998 = vsel %vm820, %v1995, %v1997
        %v1999 = vrot.slane %v1877, 1
        %v2000 = vrot.slane %v1878, 1
        %v2001 = vsel %vm820, %v1999, %v2000
        %v2002 = vrot.slane %v1879, 1
        %v2003 = vsel %vm820, %v2000, %v2002
        %v2004 = vrot.slane %v1880, 1
        %v2005 = vrot.slane %v1881, 1
        %v2006 = vsel %vm820, %v2004, %v2005
        %v2007 = vrot.slane %v1882, 1
        %v2008 = vsel %vm820, %v2005, %v2007
        %v2009 = vrot.slane %v1883, 1
        %v2010 = vrot.slane %v1884, 1
        %v2011 = vsel %vm820, %v2009, %v2010
        %v2012 = vrot.slane %v1885, 1
        %v2013 = vsel %vm820, %v2010, %v2012
        %v2046 = vadd.f32 %v1802, %v1936
        %v2047 = vadd.f32 %v1803, %v1938
        %v2048 = vadd.f32 %v1804, %v1941
        %v2049 = vadd.f32 %v1805, %v1943
        %v2050 = vadd.f32 %v1806, %v1946
        %v2051 = vadd.f32 %v1807, %v1948
        %v2052 = vadd.f32 %v1808, %v1951
        %v2053 = vadd.f32 %v1809, %v1953
        %v2054 = vadd.f32 %v1810, %v1956
        %v2055 = vadd.f32 %v1811, %v1958
        %v2056 = vadd.f32 %v1812, %v1961
        %v2057 = vadd.f32 %v1813, %v1963
        %v2058 = vadd.f32 %v1814, %v1966
        %v2059 = vadd.f32 %v1815, %v1968
        %v2060 = vadd.f32 %v1816, %v1971
        %v2061 = vadd.f32 %v1817, %v1973
        %v2062 = vadd.f32 %v1818, %v1976
        %v2063 = vadd.f32 %v1819, %v1978
        %v2064 = vadd.f32 %v1820, %v1981
        %v2065 = vadd.f32 %v1821, %v1983
        %v2066 = vadd.f32 %v1822, %v1986
        %v2067 = vadd.f32 %v1823, %v1988
        %v2068 = vadd.f32 %v1824, %v1991
        %v2069 = vadd.f32 %v1825, %v1993
        %v2070 = vadd.f32 %v1826, %v1996
        %v2071 = vadd.f32 %v1827, %v1998
        %v2072 = vadd.f32 %v1828, %v2001
        %v2073 = vadd.f32 %v1829, %v2003
        %v2074 = vadd.f32 %v1830, %v2006
        %v2075 = vadd.f32 %v1831, %v2008
        %v2076 = vadd.f32 %v1832, %v2011
        %v2077 = vadd.f32 %v1833, %v2013
        %v2078 = vlaneseq
        %v2079 = vshrl.u32 %v2078, 7
        %v2080 = vsub.s32 2, %v2079
        %v2081 = vrot.slane %v683, %v2080
        %v2082 = vmul.f32 %v633, %v2081
        %v2083 = vmul.f32 %v634, %v2081
        %v2084 = vmul.f32 %v635, %v2081
        %v2085 = vmul.f32 %v636, %v2081
        %v2086 = vmul.f32 %v637, %v2081
        %v2087 = vmul.f32 %v638, %v2081
        %v2088 = vmul.f32 %v639, %v2081
        %v2089 = vmul.f32 %v640, %v2081
        %v2090 = vmul.f32 %v641, %v2081
        %v2091 = vmul.f32 %v642, %v2081
        %v2092 = vmul.f32 %v643, %v2081
        %v2093 = vmul.f32 %v644, %v2081
        %v2094 = vmul.f32 %v645, %v2081
        %v2095 = vmul.f32 %v646, %v2081
        %v2096 = vmul.f32 %v647, %v2081
        %v2097 = vmul.f32 %v648, %v2081
        %v2098 = vmul.f32 %v649, %v2081
        %v2099 = vmul.f32 %v650, %v2081
        %v2100 = vmul.f32 %v651, %v2081
        %v2101 = vmul.f32 %v652, %v2081
        %v2102 = vmul.f32 %v653, %v2081
        %v2103 = vmul.f32 %v654, %v2081
        %v2104 = vmul.f32 %v655, %v2081
        %v2105 = vmul.f32 %v656, %v2081
        %v2106 = vmul.f32 %v657, %v2081
        %v2107 = vmul.f32 %v658, %v2081
        %v2108 = vmul.f32 %v659, %v2081
        %v2109 = vmul.f32 %v660, %v2081
        %v2110 = vmul.f32 %v661, %v2081
        %v2111 = vmul.f32 %v662, %v2081
        %v2112 = vmul.f32 %v663, %v2081
        %v2113 = vmul.f32 %v664, %v2081
        %v2114 = vmul.f32 %v665, %v2081
        %v2115 = vmul.f32 %v666, %v2081
        %v2116 = vmul.f32 %v667, %v2081
        %v2117 = vmul.f32 %v668, %v2081
        %v2118 = vmul.f32 %v669, %v2081
        %v2119 = vmul.f32 %v670, %v2081
        %v2120 = vmul.f32 %v671, %v2081
        %v2121 = vmul.f32 %v672, %v2081
        %v2122 = vmul.f32 %v673, %v2081
        %v2123 = vmul.f32 %v674, %v2081
        %v2124 = vmul.f32 %v675, %v2081
        %v2125 = vmul.f32 %v676, %v2081
        %v2126 = vmul.f32 %v677, %v2081
        %v2127 = vmul.f32 %v678, %v2081
        %v2128 = vmul.f32 %v679, %v2081
        %v2129 = vmul.f32 %v680, %v2081
        %v2178 = vrot.slane %v2082, 2
        %v2179 = vrot.slane %v2083, 2
        %v2180 = vsel %vm1065, %v2178, %v2179
        %v2181 = vrot.slane %v2084, 2
        %v2182 = vsel %vm1065, %v2179, %v2181
        %v2183 = vrot.slane %v2085, 2
        %v2184 = vrot.slane %v2086, 2
        %v2185 = vsel %vm1065, %v2183, %v2184
        %v2186 = vrot.slane %v2087, 2
        %v2187 = vsel %vm1065, %v2184, %v2186
        %v2188 = vrot.slane %v2088, 2
        %v2189 = vrot.slane %v2089, 2
        %v2190 = vsel %vm1065, %v2188, %v2189
        %v2191 = vrot.slane %v2090, 2
        %v2192 = vsel %vm1065, %v2189, %v2191
        %v2193 = vrot.slane %v2091, 2
        %v2194 = vrot.slane %v2092, 2
        %v2195 = vsel %vm1065, %v2193, %v2194
        %v2196 = vrot.slane %v2093, 2
        %v2197 = vsel %vm1065, %v2194, %v2196
        %v2198 = vrot.slane %v2094, 2
        %v2199 = vrot.slane %v2095, 2
        %v2200 = vsel %vm1065, %v2198, %v2199
        %v2201 = vrot.slane %v2096, 2
        %v2202 = vsel %vm1065, %v2199, %v2201
        %v2203 = vrot.slane %v2097, 2
        %v2204 = vrot.slane %v2098, 2
        %v2205 = vsel %vm1065, %v2203, %v2204
        %v2206 = vrot.slane %v2099, 2
        %v2207 = vsel %vm1065, %v2204, %v2206
        %v2208 = vrot.slane %v2100, 2
        %v2209 = vrot.slane %v2101, 2
        %v2210 = vsel %vm1065, %v2208, %v2209
        %v2211 = vrot.slane %v2102, 2
        %v2212 = vsel %vm1065, %v2209, %v2211
        %v2213 = vrot.slane %v2103, 2
        %v2214 = vrot.slane %v2104, 2
        %v2215 = vsel %vm1065, %v2213, %v2214
        %v2216 = vrot.slane %v2105, 2
        %v2217 = vsel %vm1065, %v2214, %v2216
        %v2218 = vrot.slane %v2106, 2
        %v2219 = vrot.slane %v2107, 2
        %v2220 = vsel %vm1065, %v2218, %v2219
        %v2221 = vrot.slane %v2108, 2
        %v2222 = vsel %vm1065, %v2219, %v2221
        %v2223 = vrot.slane %v2109, 2
        %v2224 = vrot.slane %v2110, 2
        %v2225 = vsel %vm1065, %v2223, %v2224
        %v2226 = vrot.slane %v2111, 2
        %v2227 = vsel %vm1065, %v2224, %v2226
        %v2228 = vrot.slane %v2112, 2
        %v2229 = vrot.slane %v2113, 2
        %v2230 = vsel %vm1065, %v2228, %v2229
        %v2231 = vrot.slane %v2114, 2
        %v2232 = vsel %vm1065, %v2229, %v2231
        %v2233 = vrot.slane %v2115, 2
        %v2234 = vrot.slane %v2116, 2
        %v2235 = vsel %vm1065, %v2233, %v2234
        %v2236 = vrot.slane %v2117, 2
        %v2237 = vsel %vm1065, %v2234, %v2236
        %v2238 = vrot.slane %v2118, 2
        %v2239 = vrot.slane %v2119, 2
        %v2240 = vsel %vm1065, %v2238, %v2239
        %v2241 = vrot.slane %v2120, 2
        %v2242 = vsel %vm1065, %v2239, %v2241
        %v2243 = vrot.slane %v2121, 2
        %v2244 = vrot.slane %v2122, 2
        %v2245 = vsel %vm1065, %v2243, %v2244
        %v2246 = vrot.slane %v2123, 2
        %v2247 = vsel %vm1065, %v2244, %v2246
        %v2248 = vrot.slane %v2124, 2
        %v2249 = vrot.slane %v2125, 2
        %v2250 = vsel %vm1065, %v2248, %v2249
        %v2251 = vrot.slane %v2126, 2
        %v2252 = vsel %vm1065, %v2249, %v2251
        %v2253 = vrot.slane %v2127, 2
        %v2254 = vrot.slane %v2128, 2
        %v2255 = vsel %vm1065, %v2253, %v2254
        %v2256 = vrot.slane %v2129, 2
        %v2257 = vsel %vm1065, %v2254, %v2256
        %v2290 = vadd.f32 %v2046, %v2180
        %v2291 = vadd.f32 %v2047, %v2182
        %v2292 = vadd.f32 %v2048, %v2185
        %v2293 = vadd.f32 %v2049, %v2187
        %v2294 = vadd.f32 %v2050, %v2190
        %v2295 = vadd.f32 %v2051, %v2192
        %v2296 = vadd.f32 %v2052, %v2195
        %v2297 = vadd.f32 %v2053, %v2197
        %v2298 = vadd.f32 %v2054, %v2200
        %v2299 = vadd.f32 %v2055, %v2202
        %v2300 = vadd.f32 %v2056, %v2205
        %v2301 = vadd.f32 %v2057, %v2207
        %v2302 = vadd.f32 %v2058, %v2210
        %v2303 = vadd.f32 %v2059, %v2212
        %v2304 = vadd.f32 %v2060, %v2215
        %v2305 = vadd.f32 %v2061, %v2217
        %v2306 = vadd.f32 %v2062, %v2220
        %v2307 = vadd.f32 %v2063, %v2222
        %v2308 = vadd.f32 %v2064, %v2225
        %v2309 = vadd.f32 %v2065, %v2227
        %v2310 = vadd.f32 %v2066, %v2230
        %v2311 = vadd.f32 %v2067, %v2232
        %v2312 = vadd.f32 %v2068, %v2235
        %v2313 = vadd.f32 %v2069, %v2237
        %v2314 = vadd.f32 %v2070, %v2240
        %v2315 = vadd.f32 %v2071, %v2242
        %v2316 = vadd.f32 %v2072, %v2245
        %v2317 = vadd.f32 %v2073, %v2247
        %v2318 = vadd.f32 %v2074, %v2250
        %v2319 = vadd.f32 %v2075, %v2252
        %v2320 = vadd.f32 %v2076, %v2255
        %v2321 = vadd.f32 %v2077, %v2257
        %v2322 = vld [vmem:[%s2] sm:$0x1]
        %v2324 = vlaneseq
        %v2325 = vshrl.u32 %v2324, 7
        %v2326 = vsub.s32 0, %v2325
        %v2327 = vrot.slane %v2322, %v2326
        %v2329 = vadd.f32 %v2290, %v2327
        %v2330 = vadd.f32 %v2291, %v2327
        %v2331 = vadd.f32 %v2292, %v2327
        %v2332 = vadd.f32 %v2293, %v2327
        %v2333 = vadd.f32 %v2294, %v2327
        %v2334 = vadd.f32 %v2295, %v2327
        %v2335 = vadd.f32 %v2296, %v2327
        %v2336 = vadd.f32 %v2297, %v2327
        %v2337 = vadd.f32 %v2298, %v2327
        %v2338 = vadd.f32 %v2299, %v2327
        %v2339 = vadd.f32 %v2300, %v2327
        %v2340 = vadd.f32 %v2301, %v2327
        %v2341 = vadd.f32 %v2302, %v2327
        %v2342 = vadd.f32 %v2303, %v2327
        %v2343 = vadd.f32 %v2304, %v2327
        %v2344 = vadd.f32 %v2305, %v2327
        %v2345 = vadd.f32 %v2306, %v2327
        %v2346 = vadd.f32 %v2307, %v2327
        %v2347 = vadd.f32 %v2308, %v2327
        %v2348 = vadd.f32 %v2309, %v2327
        %v2349 = vadd.f32 %v2310, %v2327
        %v2350 = vadd.f32 %v2311, %v2327
        %v2351 = vadd.f32 %v2312, %v2327
        %v2352 = vadd.f32 %v2313, %v2327
        %v2353 = vadd.f32 %v2314, %v2327
        %v2354 = vadd.f32 %v2315, %v2327
        %v2355 = vadd.f32 %v2316, %v2327
        %v2356 = vadd.f32 %v2317, %v2327
        %v2357 = vadd.f32 %v2318, %v2327
        %v2358 = vadd.f32 %v2319, %v2327
        %v2359 = vadd.f32 %v2320, %v2327
        %v2360 = vadd.f32 %v2321, %v2327
        %v2361 = vmax.f32 %v2329, 0.0
        %v2362 = vmax.f32 %v2330, 0.0
        %v2363 = vmax.f32 %v2331, 0.0
        %v2364 = vmax.f32 %v2332, 0.0
        %v2365 = vmax.f32 %v2333, 0.0
        %v2366 = vmax.f32 %v2334, 0.0
        %v2367 = vmax.f32 %v2335, 0.0
        %v2368 = vmax.f32 %v2336, 0.0
        %v2369 = vmax.f32 %v2337, 0.0
        %v2370 = vmax.f32 %v2338, 0.0
        %v2371 = vmax.f32 %v2339, 0.0
        %v2372 = vmax.f32 %v2340, 0.0
        %v2373 = vmax.f32 %v2341, 0.0
        %v2374 = vmax.f32 %v2342, 0.0
        %v2375 = vmax.f32 %v2343, 0.0
        %v2376 = vmax.f32 %v2344, 0.0
        %v2377 = vmax.f32 %v2345, 0.0
        %v2378 = vmax.f32 %v2346, 0.0
        %v2379 = vmax.f32 %v2347, 0.0
        %v2380 = vmax.f32 %v2348, 0.0
        %v2381 = vmax.f32 %v2349, 0.0
        %v2382 = vmax.f32 %v2350, 0.0
        %v2383 = vmax.f32 %v2351, 0.0
        %v2384 = vmax.f32 %v2352, 0.0
        %v2385 = vmax.f32 %v2353, 0.0
        %v2386 = vmax.f32 %v2354, 0.0
        %v2387 = vmax.f32 %v2355, 0.0
        %v2388 = vmax.f32 %v2356, 0.0
        %v2389 = vmax.f32 %v2357, 0.0
        %v2390 = vmax.f32 %v2358, 0.0
        %v2391 = vmax.f32 %v2359, 0.0
        %v2392 = vmax.f32 %v2360, 0.0
        %v2393 = vld [vmem:[%s3] sm:$0xff]
        %v2394 = vld [vmem:[%s3 + $0x8] sm:$0xff]
        %v2395 = vld [vmem:[%s4] sm:$0xff]
        %v2396 = vld [vmem:[%s4 + $0x8] sm:$0xff]
        %2398 = vset.pattern.permute.xlu0 0
        %2399 = vperm.xlu0 %2398, %v2395
        %v2400 = vpop.permute.xlu0 %2399
        %2403 = vset.pattern.permute.xlu0 0
        %2404 = vperm.xlu0 %2403, %v2396
        %v2405 = vpop.permute.xlu0 %2404
        %2407 = vmatprep.subr.mxu0 0.0
        %2408 = vmatpush1.xpose.msra.mxu0 %v2376
        %2409 = vmatprep.subr.mxu0 0.0
        %2410 = vmatpush1.xpose.msra.mxu0 %v2375
        %2411 = vmatprep.subr.mxu0 0.0
        %2412 = vmatpush1.xpose.msra.mxu0 %v2374
        %2413 = vmatprep.subr.mxu0 0.0
        %2414 = vmatpush1.xpose.msra.mxu0 %v2373
        %2415 = vmatprep.subr.mxu0 0.0
        %2416 = vmatpush1.xpose.msra.mxu0 %v2372
        %2417 = vmatprep.subr.mxu0 0.0
        %2418 = vmatpush1.xpose.msra.mxu0 %v2371
        %2419 = vmatprep.subr.mxu0 0.0
        %2420 = vmatpush1.xpose.msra.mxu0 %v2370
        %2421 = vmatprep.subr.mxu0 0.0
        %2422 = vmatpush1.xpose.msra.mxu0 %v2369
        %2423 = vmatprep.subr.mxu0 0.0
        %2424 = vmatpush1.xpose.msra.mxu0 %v2368
        %2425 = vmatprep.subr.mxu0 0.0
        %2426 = vmatpush1.xpose.msra.mxu0 %v2367
        %2427 = vmatprep.subr.mxu0 0.0
        %2428 = vmatpush1.xpose.msra.mxu0 %v2366
        %2429 = vmatprep.subr.mxu0 0.0
        %2430 = vmatpush1.xpose.msra.mxu0 %v2365
        %2431 = vmatprep.subr.mxu0 0.0
        %2432 = vmatpush1.xpose.msra.mxu0 %v2364
        %2433 = vmatprep.subr.mxu0 0.0
        %2434 = vmatpush1.xpose.msra.mxu0 %v2363
        %2435 = vmatprep.subr.mxu0 0.0
        %2436 = vmatpush1.xpose.msra.mxu0 %v2362
        %2437 = vmatprep.subr.mxu0 0.0
        %2438 = vmatpush1.xpose.msra.mxu0 %v2361
        %2439 = vmatprep.subr.mxu0 0.0
        %2440 = vmatpush2.xpose.msra.mxu0 %v2392
        %2441 = vmatprep.subr.mxu0 0.0
        %2442 = vmatpush2.xpose.msra.mxu0 %v2391
        %2443 = vmatprep.subr.mxu0 0.0
        %2444 = vmatpush2.xpose.msra.mxu0 %v2390
        %2445 = vmatprep.subr.mxu0 0.0
        %2446 = vmatpush2.xpose.msra.mxu0 %v2389
        %2447 = vmatprep.subr.mxu0 0.0
        %2448 = vmatpush2.xpose.msra.mxu0 %v2388
        %2449 = vmatprep.subr.mxu0 0.0
        %2450 = vmatpush2.xpose.msra.mxu0 %v2387
        %2451 = vmatprep.subr.mxu0 0.0
        %2452 = vmatpush2.xpose.msra.mxu0 %v2386
        %2453 = vmatprep.subr.mxu0 0.0
        %2454 = vmatpush2.xpose.msra.mxu0 %v2385
        %2455 = vmatprep.subr.mxu0 0.0
        %2456 = vmatpush2.xpose.msra.mxu0 %v2384
        %2457 = vmatprep.subr.mxu0 0.0
        %2458 = vmatpush2.xpose.msra.mxu0 %v2383
        %2459 = vmatprep.subr.mxu0 0.0
        %2460 = vmatpush2.xpose.msra.mxu0 %v2382
        %2461 = vmatprep.subr.mxu0 0.0
        %2462 = vmatpush2.xpose.msra.mxu0 %v2381
        %2463 = vmatprep.subr.mxu0 0.0
        %2464 = vmatpush2.xpose.msra.mxu0 %v2380
        %2465 = vmatprep.subr.mxu0 0.0
        %2466 = vmatpush2.xpose.msra.mxu0 %v2379
        %2467 = vmatprep.subr.mxu0 0.0
        %2468 = vmatpush2.xpose.msra.mxu0 %v2378
        %2469 = vmatprep.subr.mxu0 0.0
        %2470 = vmatpush2.xpose.msra.mxu0 %v2377
        %2471 = vmatprep.mubr.f32.mxu0 0.0
        %2472 = vmatmul.mubr.f32.gmra.mxu0 %v2393
        %v2473 = vpop.f32.mrf.mxu0
        %v2474 = vadd.f32 %v2400, %v2473
        %v2475 = vpop.f32.mrf.mxu0
        %v2476 = vadd.f32 %v2400, %v2475
        %2477 = vmatprep.mubr.f32.mxu0 0.0
        %2478 = vmatmul.mubr.f32.gmra.mxu0 %v2394
        %v2479 = vpop.f32.mrf.mxu0
        %v2480 = vadd.f32 %v2405, %v2479
        %v2481 = vpop.f32.mrf.mxu0
        %v2482 = vadd.f32 %v2405, %v2481
        %2483 = vdwg.mxu0
        %v2484 = vmax.f32 %v2474, 0.0
        %v2485 = vmax.f32 %v2476, 0.0
        %v2486 = vmax.f32 %v2480, 0.0
        %v2487 = vmax.f32 %v2482, 0.0
        %2488 = vst [vmem:[%s190] sm:$0xff] %v2484
        %2489 = vst [vmem:[%s190 + $0x8] sm:$0xff] %v2485
        %2490 = vst [vmem:[%s190 + $0x10] sm:$0xff] %v2486
        %2491 = vst [vmem:[%s190 + $0x18] sm:$0xff] %v2487
        %s2492 = sand.u32 %s125, 1
        %s2493 = scalar_lea.sflag [#allocation5], %s2492
        %s2494 = sand.u32 %s125, 1
        %s2495 = smul.addr %s2494, 32
        %s2496 = scalar_lea.vmem [#allocation4], %s2495
        // Predicated region
        $region119: #{tpu_custom_call.1} parent=35 // pred_check
          %p2497 = pneg %p135
        $region120: #{tpu_custom_call.1} parent=35 // pred_check_branch
          %2499 = sbr.rel (%p2497) target = $region122
        $region121: #{tpu_custom_call.1} parent=35 // pred_region
          %s2500 = smul.u32 2, %s24
          %s2502 = ssub.s32 512, 512
          %2503 = vsyncadd %s2493, %s2502
          %s2504 = smul.addr %s23, 4
          %s2505 = sadd.s32 %s2500, %s2504
          %s2506 = smul.addr %s2505, 128
          %s2507 = scalar_lea.hbm %s5, %s2506
          %s2508 = sshll.u32 %s2496, 4
          %s2509 = int_to_ptr.vmem [resolvable:$true] %s2508
          %2514 = dma.vmem_to_hbm [thread:$0]  %s2509, 512, %s2507, %s2493, 256, 256, 16
        $region122: #{tpu_custom_call.1} parent=35 // pred_fallthru
          _
      $region36: #{tpu_custom_call.1} parent=5 // pred_fallthru
        _
      %p2515 = scmp.le.s32.totalorder 2, %s14
      // Predicated region
      $region123: #{tpu_custom_call.1} parent=5 // pred_check
        %p2516 = pneg %p2515
      $region124: #{tpu_custom_call.1} parent=5 // pred_check_branch
        %2518 = sbr.rel (%p2516) target = $region126
      $region125: #{tpu_custom_call.1} parent=5 // pred_region
        %s2519 = ssub.s32 %s14, 2
        // Predicated region
        $region127: #{tpu_custom_call.1} parent=125 // pred_check
          %p2520 = pneg %p141
        $region128: #{tpu_custom_call.1} parent=125 // pred_check_branch
          %2522 = sbr.rel (%p2520) target = $region130
        $region129: #{tpu_custom_call.1} parent=125 // pred_region
          %s2523 = sand.u32 %s126, 1
          %s2524 = scalar_lea.sflag [#allocation5], %s2523
          %s2525 = sand.u32 %s126, 1
          %s2526 = smul.addr %s2525, 32
          %s2527 = scalar_lea.vmem [#allocation4], %s2526
          %2528 = dma.done %s2524, 512
        $region130: #{tpu_custom_call.1} parent=125 // pred_fallthru
          _
      $region126: #{tpu_custom_call.1} parent=5 // pred_fallthru
        _
    $region6: #{tpu_custom_call.1} parent=1 // loop_footer
      %s18 = sadd.s32 1, %s14
    $region7: #{tpu_custom_call.1} parent=1 // loop_footer_branch
      %13 = sbr.rel target = $region3
    $region8: #{tpu_custom_call.1} parent=1 // loop_exit
      _
    %2529 = vsyncpa [#allocation5], 1
    %s2530 = scalar_lea.sflag [#allocation5], 1
    %2531 = vsyncpa %s2530, 1
  %2532 = vsyncmov [#allocation3]
  %s2533 = vpop.sfrf %2532
  %p2534 = scmp.eq.s32.totalorder %s2533, 0
  %p2535 = pneg %p2534
  %2537 = shalt.err (%p2535)
  %s2538 = scalar_lea.sflag [#allocation3], 1
  %2539 = vsyncmov %s2538
  %s2540 = vpop.sfrf %2539
  %p2541 = scmp.eq.s32.totalorder %s2540, 0
  %p2542 = pneg %p2541
  %2544 = shalt.err (%p2542)

</llo_original>
